<compile_context>
chip_gen: v7x
topology: tpu7x:2x2x1
jax: 0.10.0
libtpu: 0.0.40
codegen_flags: <defaults>
</compile_context>

<pallas_src>
import functools

import jax
import jax.numpy as jnp
from jax.experimental import pallas as pl
from jax.experimental.pallas import tpu as pltpu

# --- small ALBERT-like config ---
VOCAB = 64
MAX_POS = 16
EMBED = 16
HIDDEN = 32
HEADS = 2
HEAD_DIM = HIDDEN // HEADS
INTER = 64
LAYERS = 2
LN_EPS = 1e-12

_W_NAMES = ("emb_ln_g", "emb_ln_b", "emb_proj_w", "emb_proj_b",
            "qkv_w", "qkv_b", "ao_w", "ao_b", "attn_ln_g", "attn_ln_b",
            "ffn_w1", "ffn_b1", "ffn_w2", "ffn_b2", "ffn_ln_g", "ffn_ln_b",
            "fc_w", "fc_b")


def _ln(x, g, b):
    # LayerNorm kept in f32 (eps = 1e-12 as in ALBERT).
    mean = jnp.mean(x, axis=-1, keepdims=True)
    xc = x - mean
    var = jnp.mean(xc * xc, axis=-1, keepdims=True)
    return xc * jax.lax.rsqrt(var + LN_EPS) * g + b


# ----------------------- single fused forward kernel --------------------------
def _fused_forward_kernel(h_ref, mask_ref,
                          emb_ln_g, emb_ln_b, emb_proj_w, emb_proj_b,
                          qkv_w, qkv_b, ao_w, ao_b, attn_ln_g, attn_ln_b,
                          ffn_w1, ffn_b1, ffn_w2, ffn_b2, ffn_ln_g, ffn_ln_b,
                          fc_w, fc_b,
                          out_ref, ctx_ref):
    # h_ref:    [S, EMBED]  rows of this batch element (summed embeddings)
    # mask_ref: [1, 1, S]   its attention mask (1.0 = keep)
    # ctx_ref:  [S, HIDDEN] VMEM scratch for the attention context

    # Embedding LayerNorm (no residual / no zero-array DMA) + projection to HIDDEN.
    x = _ln(h_ref[...], emb_ln_g[...], emb_ln_b[...])
    x = jnp.dot(x, emb_proj_w[...], preferred_element_type=jnp.float32) + emb_proj_b[...]

    # Extended attention-mask bias built in-kernel: [1, S]
    bias = (1.0 - mask_ref[0]) * -10000.0
    scale = 1.0 / (HEAD_DIM ** 0.5)

    # ALBERT: the SAME layer weights applied LAYERS times (statically unrolled).
    for _ in range(LAYERS):
        # Fused QKV: one MXU push with N = 3*HIDDEN, then lane-axis head slicing.
        qkv = jnp.dot(x, qkv_w[...], preferred_element_type=jnp.float32) + qkv_b[...]
        for hd in range(HEADS):
            lo = hd * HEAD_DIM
            qh = qkv[:, lo:lo + HEAD_DIM]                              # [S, dh]
            kh = qkv[:, HIDDEN + lo:HIDDEN + lo + HEAD_DIM]            # [S, dh]
            vh = qkv[:, 2 * HIDDEN + lo:2 * HIDDEN + lo + HEAD_DIM]    # [S, dh]
            # q @ k^T without an explicit transpose (contract on head_dim).
            scores = jax.lax.dot_general(
                qh, kh, (((1,), (1,)), ((), ())),
                preferred_element_type=jnp.float32) * scale            # [S, S]
            probs = jax.nn.softmax(scores + bias, axis=-1)             # f32
            ctx_ref[:, lo:lo + HEAD_DIM] = jnp.dot(
                probs, vh, preferred_element_type=jnp.float32)
        attn_out = jnp.dot(ctx_ref[...], ao_w[...],
                           preferred_element_type=jnp.float32) + ao_b[...]
        x = _ln(attn_out + x, attn_ln_g[...], attn_ln_b[...])
        ff = jnp.dot(x, ffn_w1[...], preferred_element_type=jnp.float32) + ffn_b1[...]
        ff = jax.nn.gelu(ff, approximate=True)          # ALBERT "gelu_new"
        ff = jnp.dot(ff, ffn_w2[...], preferred_element_type=jnp.float32) + ffn_b2[...]
        x = _ln(ff + x, ffn_ln_g[...], ffn_ln_b[...])

    # Classification head on the CLS token (row 0), fused fc + sigmoid.
    cls = x[0:1, :]                                                     # [1, H]
    logit = jnp.dot(cls, fc_w[...], preferred_element_type=jnp.float32) + fc_b[...]
    out_ref[0] = jax.nn.sigmoid(logit)                                  # [1, 1]


def _const_index_map(b, *, ndim):
    return (0,) * ndim


# ----------------- parameter init (deterministic, synthetic) ------------------
def init_params(key):
    def normal(k, shape, std=0.02):
        return std * jax.random.normal(k, shape, dtype=jnp.float32)

    ks = jax.random.split(key, 12)
    p = {}
    p["word_emb"] = normal(ks[0], (VOCAB, EMBED))
    p["pos_emb"] = normal(ks[1], (MAX_POS, EMBED))
    p["tok_emb"] = normal(ks[2], (2, EMBED))
    p["emb_ln_g"] = jnp.ones((1, EMBED), jnp.float32)
    p["emb_ln_b"] = jnp.zeros((1, EMBED), jnp.float32)
    p["emb_proj_w"] = normal(ks[3], (EMBED, HIDDEN))
    p["emb_proj_b"] = jnp.zeros((1, HIDDEN), jnp.float32)
    # single shared ALBERT layer; Q/K/V folded into one [H, 3H] weight
    q_w = normal(ks[4], (HIDDEN, HIDDEN))
    k_w = normal(ks[5], (HIDDEN, HIDDEN))
    v_w = normal(ks[6], (HIDDEN, HIDDEN))
    p["qkv_w"] = jnp.concatenate([q_w, k_w, v_w], axis=1)
    p["qkv_b"] = jnp.zeros((1, 3 * HIDDEN), jnp.float32)
    p["ao_w"] = normal(ks[7], (HIDDEN, HIDDEN)); p["ao_b"] = jnp.zeros((1, HIDDEN), jnp.float32)
    p["attn_ln_g"] = jnp.ones((1, HIDDEN), jnp.float32)
    p["attn_ln_b"] = jnp.zeros((1, HIDDEN), jnp.float32)
    p["ffn_w1"] = normal(ks[8], (HIDDEN, INTER)); p["ffn_b1"] = jnp.zeros((1, INTER), jnp.float32)
    p["ffn_w2"] = normal(ks[9], (INTER, HIDDEN)); p["ffn_b2"] = jnp.zeros((1, HIDDEN), jnp.float32)
    p["ffn_ln_g"] = jnp.ones((1, HIDDEN), jnp.float32)
    p["ffn_ln_b"] = jnp.zeros((1, HIDDEN), jnp.float32)
    # classification head (nn.Linear(hidden, 1) + sigmoid)
    p["fc_w"] = normal(ks[10], (HIDDEN, 1)); p["fc_b"] = jnp.zeros((1, 1), jnp.float32)
    return p


# ----------------- forward: one fused pallas_call over the batch --------------
def name_classifier_forward(params, input_ids, attention_mask):
    B, S = input_ids.shape

    # Token / position / type embedding gather stays in plain JAX (glue).
    h = (params["word_emb"][input_ids]
         + params["pos_emb"][jnp.arange(S)][None, :, :]
         + params["tok_emb"][0][None, None, :])                 # [B, S, E]
    h = h.reshape(B * S, EMBED).astype(jnp.float32)
    mask = attention_mask.astype(jnp.float32).reshape(B, 1, S)  # bias built in-kernel

    weights = [params[name] for name in _W_NAMES]

    in_specs = [
        pl.BlockSpec((S, EMBED), lambda b: (b, 0)),      # rows of this batch element
        pl.BlockSpec((1, 1, S), lambda b: (b, 0, 0)),    # its attention mask
    ] + [
        # full weight arrays, resident in VMEM across all grid steps
        pl.BlockSpec(w.shape, functools.partial(_const_index_map, ndim=w.ndim))
        for w in weights
    ]

    out = pl.pallas_call(
        _fused_forward_kernel,
        out_shape=jax.ShapeDtypeStruct((B, 1, 1), jnp.float32),
        grid_spec=pltpu.PrefetchScalarGridSpec(
            num_scalar_prefetch=0,
            grid=(B,),
            in_specs=in_specs,
            out_specs=pl.BlockSpec((1, 1, 1), lambda b: (b, 0, 0)),
            scratch_shapes=[pltpu.VMEM((S, HIDDEN), jnp.float32)],
        ),
        # Batch axis is parallel -> shards across v7x's two TensorCores;
        # harmless (sequential loop) on v5e/v6e.
        compiler_params=pltpu.CompilerParams(dimension_semantics=("parallel",)),
    )(h, mask, *weights)
    # TODO(synk): bf16 matmul inputs (f32 accum) would halve DMA bytes on
    # v6e/v7x; kept f32 here since the toy problem is launch-bound, not BW-bound.
    return out.reshape(B, 1)


if __name__ == "__main__":
    key = jax.random.PRNGKey(0)
    pkey, ikey = jax.random.split(key)
    params = init_params(pkey)

    B, S = 2, 8
    input_ids = jax.random.randint(ikey, (B, S), 0, VOCAB, dtype=jnp.int32)
    attention_mask = jnp.array([[1, 1, 1, 1, 1, 1, 0, 0],
                                [1, 1, 1, 1, 0, 0, 0, 0]], dtype=jnp.int32)

    fwd = jax.jit(name_classifier_forward)
    out = jax.block_until_ready(fwd(params, input_ids, attention_mask))
    assert out.shape == (B, 1)
    assert bool(jnp.all((out >= 0.0) & (out <= 1.0)))
    print("KERNEL_OK")
</pallas_src>

<mosaic_0001>
module attributes {stable_mosaic.version = 11 : i64} {
  func.func @_fused_forward_kernel(%arg0: i32, %arg1: memref<8x16xf32, #tpu.memory_space<vmem>>, %arg2: memref<1x1x8xf32, #tpu.memory_space<vmem>>, %arg3: memref<1x16xf32, #tpu.memory_space<vmem>>, %arg4: memref<1x16xf32, #tpu.memory_space<vmem>>, %arg5: memref<16x32xf32, #tpu.memory_space<vmem>>, %arg6: memref<1x32xf32, #tpu.memory_space<vmem>>, %arg7: memref<32x96xf32, #tpu.memory_space<vmem>>, %arg8: memref<1x96xf32, #tpu.memory_space<vmem>>, %arg9: memref<32x32xf32, #tpu.memory_space<vmem>>, %arg10: memref<1x32xf32, #tpu.memory_space<vmem>>, %arg11: memref<1x32xf32, #tpu.memory_space<vmem>>, %arg12: memref<1x32xf32, #tpu.memory_space<vmem>>, %arg13: memref<32x64xf32, #tpu.memory_space<vmem>>, %arg14: memref<1x64xf32, #tpu.memory_space<vmem>>, %arg15: memref<64x32xf32, #tpu.memory_space<vmem>>, %arg16: memref<1x32xf32, #tpu.memory_space<vmem>>, %arg17: memref<1x32xf32, #tpu.memory_space<vmem>>, %arg18: memref<1x32xf32, #tpu.memory_space<vmem>>, %arg19: memref<32x1xf32, #tpu.memory_space<vmem>>, %arg20: memref<1x1xf32, #tpu.memory_space<vmem>>, %arg21: memref<1x1x1xf32, #tpu.memory_space<vmem>>, %arg22: memref<8x32xf32, #tpu.memory_space<vmem>>) attributes {dimension_semantics = [#tpu.dimension_semantics<parallel>], iteration_bounds = array<i64: 2>, scalar_prefetch = 0 : i64, scratch_operands = 1 : i64, tpu.core_type = #tpu.core_type<tc>, window_params = [{transform_indices = @transform_0, window_bounds = array<i64: 8, 16>}, {transform_indices = @transform_1, window_bounds = array<i64: 1, 1, 8>}, {pipeline_mode = #tpu.pipeline_mode<synchronous>, transform_indices = @transform_2, window_bounds = array<i64: 1, 16>}, {pipeline_mode = #tpu.pipeline_mode<synchronous>, transform_indices = @transform_3, window_bounds = array<i64: 1, 16>}, {pipeline_mode = #tpu.pipeline_mode<synchronous>, transform_indices = @transform_4, window_bounds = array<i64: 16, 32>}, {pipeline_mode = #tpu.pipeline_mode<synchronous>, transform_indices = @transform_5, window_bounds = array<i64: 1, 32>}, {pipeline_mode = #tpu.pipeline_mode<synchronous>, transform_indices = @transform_6, window_bounds = array<i64: 32, 96>}, {pipeline_mode = #tpu.pipeline_mode<synchronous>, transform_indices = @transform_7, window_bounds = array<i64: 1, 96>}, {pipeline_mode = #tpu.pipeline_mode<synchronous>, transform_indices = @transform_8, window_bounds = array<i64: 32, 32>}, {pipeline_mode = #tpu.pipeline_mode<synchronous>, transform_indices = @transform_9, window_bounds = array<i64: 1, 32>}, {pipeline_mode = #tpu.pipeline_mode<synchronous>, transform_indices = @transform_10, window_bounds = array<i64: 1, 32>}, {pipeline_mode = #tpu.pipeline_mode<synchronous>, transform_indices = @transform_11, window_bounds = array<i64: 1, 32>}, {pipeline_mode = #tpu.pipeline_mode<synchronous>, transform_indices = @transform_12, window_bounds = array<i64: 32, 64>}, {pipeline_mode = #tpu.pipeline_mode<synchronous>, transform_indices = @transform_13, window_bounds = array<i64: 1, 64>}, {pipeline_mode = #tpu.pipeline_mode<synchronous>, transform_indices = @transform_14, window_bounds = array<i64: 64, 32>}, {pipeline_mode = #tpu.pipeline_mode<synchronous>, transform_indices = @transform_15, window_bounds = array<i64: 1, 32>}, {pipeline_mode = #tpu.pipeline_mode<synchronous>, transform_indices = @transform_16, window_bounds = array<i64: 1, 32>}, {pipeline_mode = #tpu.pipeline_mode<synchronous>, transform_indices = @transform_17, window_bounds = array<i64: 1, 32>}, {pipeline_mode = #tpu.pipeline_mode<synchronous>, transform_indices = @transform_18, window_bounds = array<i64: 32, 1>}, {pipeline_mode = #tpu.pipeline_mode<synchronous>, transform_indices = @transform_19, window_bounds = array<i64: 1, 1>}, {transform_indices = @transform_20, window_bounds = array<i64: 1, 1, 1>}]} {
    %c0 = arith.constant 0 : index
    %c0_0 = arith.constant 0 : index
    %0 = vector.load %arg1[%c0, %c0_0] : memref<8x16xf32, #tpu.memory_space<vmem>>, vector<8x16xf32>
    %c0_1 = arith.constant 0 : index
    %c0_2 = arith.constant 0 : index
    %1 = vector.load %arg3[%c0_1, %c0_2] : memref<1x16xf32, #tpu.memory_space<vmem>>, vector<1x16xf32>
    %c0_3 = arith.constant 0 : index
    %c0_4 = arith.constant 0 : index
    %2 = vector.load %arg4[%c0_3, %c0_4] : memref<1x16xf32, #tpu.memory_space<vmem>>, vector<1x16xf32>
    %cst = arith.constant dense<0.000000e+00> : vector<8xf32>
    %3 = vector.multi_reduction <add>, %0, %cst [1] : vector<8x16xf32> to vector<8xf32>
    %4 = vector.shape_cast %3 : vector<8xf32> to vector<8x1xf32>
    %cst_5 = arith.constant 1.600000e+01 : f32
    %5 = vector.broadcast %cst_5 : f32 to vector<8x1xf32>
    %6 = arith.divf %4, %5 : vector<8x1xf32>
    %7 = vector.broadcast %6 : vector<8x1xf32> to vector<8x16xf32>
    %8 = arith.subf %0, %7 : vector<8x16xf32>
    %9 = arith.mulf %8, %8 : vector<8x16xf32>
    %cst_6 = arith.constant dense<0.000000e+00> : vector<8xf32>
    %10 = vector.multi_reduction <add>, %9, %cst_6 [1] : vector<8x16xf32> to vector<8xf32>
    %11 = vector.shape_cast %10 : vector<8xf32> to vector<8x1xf32>
    %cst_7 = arith.constant 1.600000e+01 : f32
    %12 = vector.broadcast %cst_7 : f32 to vector<8x1xf32>
    %13 = arith.divf %11, %12 : vector<8x1xf32>
    %cst_8 = arith.constant 9.99999996E-13 : f32
    %14 = vector.broadcast %cst_8 : f32 to vector<8x1xf32>
    %15 = arith.addf %13, %14 : vector<8x1xf32>
    %16 = math.rsqrt %15 : vector<8x1xf32>
    %17 = vector.broadcast %16 : vector<8x1xf32> to vector<8x16xf32>
    %18 = arith.mulf %8, %17 : vector<8x16xf32>
    %19 = vector.broadcast %1 : vector<1x16xf32> to vector<8x16xf32>
    %20 = arith.mulf %18, %19 : vector<8x16xf32>
    %21 = vector.broadcast %2 : vector<1x16xf32> to vector<8x16xf32>
    %22 = arith.addf %20, %21 : vector<8x16xf32>
    %c0_9 = arith.constant 0 : index
    %c0_10 = arith.constant 0 : index
    %23 = vector.load %arg5[%c0_9, %c0_10] : memref<16x32xf32, #tpu.memory_space<vmem>>, vector<16x32xf32>
    %cst_11 = arith.constant dense<0.000000e+00> : vector<8x32xf32>
    %24 = tpu.matmul %22, %23, %cst_11 {dimension_numbers = #tpu.dot_dimension_numbers<[1], [0], [0], [1], [0, 0, 1, 1], [], []>} : vector<8x16xf32>, vector<16x32xf32>, vector<8x32xf32> -> vector<8x32xf32>
    %c0_12 = arith.constant 0 : index
    %c0_13 = arith.constant 0 : index
    %25 = vector.load %arg6[%c0_12, %c0_13] : memref<1x32xf32, #tpu.memory_space<vmem>>, vector<1x32xf32>
    %26 = vector.broadcast %25 : vector<1x32xf32> to vector<8x32xf32>
    %27 = arith.addf %24, %26 : vector<8x32xf32>
    %c0_14 = arith.constant 0 : index
    %c0_15 = arith.constant 0 : index
    %c0_16 = arith.constant 0 : index
    %28 = vector.load %arg2[%c0_14, %c0_15, %c0_16] : memref<1x1x8xf32, #tpu.memory_space<vmem>>, vector<1x1x8xf32>
    %29 = vector.shape_cast %28 : vector<1x1x8xf32> to vector<1x8xf32>
    %cst_17 = arith.constant 1.000000e+00 : f32
    %30 = vector.broadcast %cst_17 : f32 to vector<1x8xf32>
    %31 = arith.subf %30, %29 : vector<1x8xf32>
    %cst_18 = arith.constant -1.000000e+04 : f32
    %32 = vector.broadcast %cst_18 : f32 to vector<1x8xf32>
    %33 = arith.mulf %31, %32 : vector<1x8xf32>
    %c0_19 = arith.constant 0 : index
    %c0_20 = arith.constant 0 : index
    %34 = vector.load %arg7[%c0_19, %c0_20] : memref<32x96xf32, #tpu.memory_space<vmem>>, vector<32x96xf32>
    %cst_21 = arith.constant dense<0.000000e+00> : vector<8x96xf32>
    %35 = tpu.matmul %27, %34, %cst_21 {dimension_numbers = #tpu.dot_dimension_numbers<[1], [0], [0], [1], [0, 0, 1, 1], [], []>} : vector<8x32xf32>, vector<32x96xf32>, vector<8x96xf32> -> vector<8x96xf32>
    %c0_22 = arith.constant 0 : index
    %c0_23 = arith.constant 0 : index
    %36 = vector.load %arg8[%c0_22, %c0_23] : memref<1x96xf32, #tpu.memory_space<vmem>>, vector<1x96xf32>
    %37 = vector.broadcast %36 : vector<1x96xf32> to vector<8x96xf32>
    %38 = arith.addf %35, %37 : vector<8x96xf32>
    %39 = vector.extract_strided_slice %38 {offsets = [0, 0], sizes = [8, 16], strides = [1, 1]} : vector<8x96xf32> to vector<8x16xf32>
    %40 = vector.extract_strided_slice %38 {offsets = [0, 32], sizes = [8, 16], strides = [1, 1]} : vector<8x96xf32> to vector<8x16xf32>
    %41 = vector.extract_strided_slice %38 {offsets = [0, 64], sizes = [8, 16], strides = [1, 1]} : vector<8x96xf32> to vector<8x16xf32>
    %cst_24 = arith.constant dense<0.000000e+00> : vector<8x8xf32>
    %42 = tpu.matmul %39, %40, %cst_24 {dimension_numbers = #tpu.dot_dimension_numbers<[1], [1], [0], [0], [0, 0, 1, 0], [], []>} : vector<8x16xf32>, vector<8x16xf32>, vector<8x8xf32> -> vector<8x8xf32>
    %cst_25 = arith.constant 2.500000e-01 : f32
    %43 = vector.broadcast %cst_25 : f32 to vector<8x8xf32>
    %44 = arith.mulf %42, %43 : vector<8x8xf32>
    %45 = vector.broadcast %33 : vector<1x8xf32> to vector<8x8xf32>
    %46 = arith.addf %44, %45 : vector<8x8xf32>
    %cst_26 = arith.constant dense<0xFF800000> : vector<8xf32>
    %47 = vector.multi_reduction <maximumf>, %46, %cst_26 [1] : vector<8x8xf32> to vector<8xf32>
    %cst_27 = arith.constant 0xFF800000 : f32
    %48 = vector.broadcast %cst_27 : f32 to vector<8xf32>
    %49 = arith.maximumf %48, %47 : vector<8xf32>
    %50 = vector.shape_cast %49 : vector<8xf32> to vector<8x1xf32>
    %51 = vector.broadcast %50 : vector<8x1xf32> to vector<8x8xf32>
    %52 = arith.subf %46, %51 : vector<8x8xf32>
    %53 = math.exp %52 : vector<8x8xf32>
    %cst_28 = arith.constant dense<0.000000e+00> : vector<8xf32>
    %54 = vector.multi_reduction <add>, %53, %cst_28 [1] : vector<8x8xf32> to vector<8xf32>
    %55 = vector.shape_cast %54 : vector<8xf32> to vector<8x1xf32>
    %56 = vector.broadcast %55 : vector<8x1xf32> to vector<8x8xf32>
    %57 = arith.divf %53, %56 : vector<8x8xf32>
    %cst_29 = arith.constant dense<0.000000e+00> : vector<8x16xf32>
    %58 = tpu.matmul %57, %41, %cst_29 {dimension_numbers = #tpu.dot_dimension_numbers<[1], [0], [0], [1], [0, 0, 1, 1], [], []>} : vector<8x8xf32>, vector<8x16xf32>, vector<8x16xf32> -> vector<8x16xf32>
    %c0_30 = arith.constant 0 : index
    %c0_31 = arith.constant 0 : index
    %59 = vector.load %arg22[%c0_30, %c0_31] : memref<8x32xf32, #tpu.memory_space<vmem>>, vector<8x16xf32>
    tpu.vector_store %arg22[%c0_30, %c0_31], %58 {strides = array<i32>} : memref<8x32xf32, #tpu.memory_space<vmem>>, vector<8x16xf32>,
    %60 = vector.extract_strided_slice %38 {offsets = [0, 16], sizes = [8, 16], strides = [1, 1]} : vector<8x96xf32> to vector<8x16xf32>
    %61 = vector.extract_strided_slice %38 {offsets = [0, 48], sizes = [8, 16], strides = [1, 1]} : vector<8x96xf32> to vector<8x16xf32>
    %62 = vector.extract_strided_slice %38 {offsets = [0, 80], sizes = [8, 16], strides = [1, 1]} : vector<8x96xf32> to vector<8x16xf32>
    %cst_32 = arith.constant dense<0.000000e+00> : vector<8x8xf32>
    %63 = tpu.matmul %60, %61, %cst_32 {dimension_numbers = #tpu.dot_dimension_numbers<[1], [1], [0], [0], [0, 0, 1, 0], [], []>} : vector<8x16xf32>, vector<8x16xf32>, vector<8x8xf32> -> vector<8x8xf32>
    %cst_33 = arith.constant 2.500000e-01 : f32
    %64 = vector.broadcast %cst_33 : f32 to vector<8x8xf32>
    %65 = arith.mulf %63, %64 : vector<8x8xf32>
    %66 = vector.broadcast %33 : vector<1x8xf32> to vector<8x8xf32>
    %67 = arith.addf %65, %66 : vector<8x8xf32>
    %cst_34 = arith.constant dense<0xFF800000> : vector<8xf32>
    %68 = vector.multi_reduction <maximumf>, %67, %cst_34 [1] : vector<8x8xf32> to vector<8xf32>
    %cst_35 = arith.constant 0xFF800000 : f32
    %69 = vector.broadcast %cst_35 : f32 to vector<8xf32>
    %70 = arith.maximumf %69, %68 : vector<8xf32>
    %71 = vector.shape_cast %70 : vector<8xf32> to vector<8x1xf32>
    %72 = vector.broadcast %71 : vector<8x1xf32> to vector<8x8xf32>
    %73 = arith.subf %67, %72 : vector<8x8xf32>
    %74 = math.exp %73 : vector<8x8xf32>
    %cst_36 = arith.constant dense<0.000000e+00> : vector<8xf32>
    %75 = vector.multi_reduction <add>, %74, %cst_36 [1] : vector<8x8xf32> to vector<8xf32>
    %76 = vector.shape_cast %75 : vector<8xf32> to vector<8x1xf32>
    %77 = vector.broadcast %76 : vector<8x1xf32> to vector<8x8xf32>
    %78 = arith.divf %74, %77 : vector<8x8xf32>
    %cst_37 = arith.constant dense<0.000000e+00> : vector<8x16xf32>
    %79 = tpu.matmul %78, %62, %cst_37 {dimension_numbers = #tpu.dot_dimension_numbers<[1], [0], [0], [1], [0, 0, 1, 1], [], []>} : vector<8x8xf32>, vector<8x16xf32>, vector<8x16xf32> -> vector<8x16xf32>
    %c0_38 = arith.constant 0 : index
    %c16 = arith.constant 16 : index
    %80 = vector.load %arg22[%c0_38, %c16] : memref<8x32xf32, #tpu.memory_space<vmem>>, vector<8x16xf32>
    tpu.vector_store %arg22[%c0_38, %c16], %79 {strides = array<i32>} : memref<8x32xf32, #tpu.memory_space<vmem>>, vector<8x16xf32>,
    %c0_39 = arith.constant 0 : index
    %c0_40 = arith.constant 0 : index
    %81 = vector.load %arg22[%c0_39, %c0_40] : memref<8x32xf32, #tpu.memory_space<vmem>>, vector<8x32xf32>
    %c0_41 = arith.constant 0 : index
    %c0_42 = arith.constant 0 : index
    %82 = vector.load %arg9[%c0_41, %c0_42] : memref<32x32xf32, #tpu.memory_space<vmem>>, vector<32x32xf32>
    %cst_43 = arith.constant dense<0.000000e+00> : vector<8x32xf32>
    %83 = tpu.matmul %81, %82, %cst_43 {dimension_numbers = #tpu.dot_dimension_numbers<[1], [0], [0], [1], [0, 0, 1, 1], [], []>} : vector<8x32xf32>, vector<32x32xf32>, vector<8x32xf32> -> vector<8x32xf32>
    %c0_44 = arith.constant 0 : index
    %c0_45 = arith.constant 0 : index
    %84 = vector.load %arg10[%c0_44, %c0_45] : memref<1x32xf32, #tpu.memory_space<vmem>>, vector<1x32xf32>
    %85 = vector.broadcast %84 : vector<1x32xf32> to vector<8x32xf32>
    %86 = arith.addf %83, %85 : vector<8x32xf32>
    %87 = arith.addf %86, %27 : vector<8x32xf32>
    %c0_46 = arith.constant 0 : index
    %c0_47 = arith.constant 0 : index
    %88 = vector.load %arg11[%c0_46, %c0_47] : memref<1x32xf32, #tpu.memory_space<vmem>>, vector<1x32xf32>
    %c0_48 = arith.constant 0 : index
    %c0_49 = arith.constant 0 : index
    %89 = vector.load %arg12[%c0_48, %c0_49] : memref<1x32xf32, #tpu.memory_space<vmem>>, vector<1x32xf32>
    %cst_50 = arith.constant dense<0.000000e+00> : vector<8xf32>
    %90 = vector.multi_reduction <add>, %87, %cst_50 [1] : vector<8x32xf32> to vector<8xf32>
    %91 = vector.shape_cast %90 : vector<8xf32> to vector<8x1xf32>
    %cst_51 = arith.constant 3.200000e+01 : f32
    %92 = vector.broadcast %cst_51 : f32 to vector<8x1xf32>
    %93 = arith.divf %91, %92 : vector<8x1xf32>
    %94 = vector.broadcast %93 : vector<8x1xf32> to vector<8x32xf32>
    %95 = arith.subf %87, %94 : vector<8x32xf32>
    %96 = arith.mulf %95, %95 : vector<8x32xf32>
    %cst_52 = arith.constant dense<0.000000e+00> : vector<8xf32>
    %97 = vector.multi_reduction <add>, %96, %cst_52 [1] : vector<8x32xf32> to vector<8xf32>
    %98 = vector.shape_cast %97 : vector<8xf32> to vector<8x1xf32>
    %cst_53 = arith.constant 3.200000e+01 : f32
    %99 = vector.broadcast %cst_53 : f32 to vector<8x1xf32>
    %100 = arith.divf %98, %99 : vector<8x1xf32>
    %cst_54 = arith.constant 9.99999996E-13 : f32
    %101 = vector.broadcast %cst_54 : f32 to vector<8x1xf32>
    %102 = arith.addf %100, %101 : vector<8x1xf32>
    %103 = math.rsqrt %102 : vector<8x1xf32>
    %104 = vector.broadcast %103 : vector<8x1xf32> to vector<8x32xf32>
    %105 = arith.mulf %95, %104 : vector<8x32xf32>
    %106 = vector.broadcast %88 : vector<1x32xf32> to vector<8x32xf32>
    %107 = arith.mulf %105, %106 : vector<8x32xf32>
    %108 = vector.broadcast %89 : vector<1x32xf32> to vector<8x32xf32>
    %109 = arith.addf %107, %108 : vector<8x32xf32>
    %c0_55 = arith.constant 0 : index
    %c0_56 = arith.constant 0 : index
    %110 = vector.load %arg13[%c0_55, %c0_56] : memref<32x64xf32, #tpu.memory_space<vmem>>, vector<32x64xf32>
    %cst_57 = arith.constant dense<0.000000e+00> : vector<8x64xf32>
    %111 = tpu.matmul %109, %110, %cst_57 {dimension_numbers = #tpu.dot_dimension_numbers<[1], [0], [0], [1], [0, 0, 1, 1], [], []>} : vector<8x32xf32>, vector<32x64xf32>, vector<8x64xf32> -> vector<8x64xf32>
    %c0_58 = arith.constant 0 : index
    %c0_59 = arith.constant 0 : index
    %112 = vector.load %arg14[%c0_58, %c0_59] : memref<1x64xf32, #tpu.memory_space<vmem>>, vector<1x64xf32>
    %113 = vector.broadcast %112 : vector<1x64xf32> to vector<8x64xf32>
    %114 = arith.addf %111, %113 : vector<8x64xf32>
    %115 = arith.mulf %114, %114 : vector<8x64xf32>
    %116 = arith.mulf %114, %115 : vector<8x64xf32>
    %cst_60 = arith.constant 4.471500e-02 : f32
    %117 = vector.broadcast %cst_60 : f32 to vector<8x64xf32>
    %118 = arith.mulf %117, %116 : vector<8x64xf32>
    %119 = arith.addf %114, %118 : vector<8x64xf32>
    %cst_61 = arith.constant 0.797884583 : f32
    %120 = vector.broadcast %cst_61 : f32 to vector<8x64xf32>
    %121 = arith.mulf %120, %119 : vector<8x64xf32>
    %122 = math.tanh %121 : vector<8x64xf32>
    %cst_62 = arith.constant 1.000000e+00 : f32
    %123 = vector.broadcast %cst_62 : f32 to vector<8x64xf32>
    %124 = arith.addf %123, %122 : vector<8x64xf32>
    %cst_63 = arith.constant 5.000000e-01 : f32
    %125 = vector.broadcast %cst_63 : f32 to vector<8x64xf32>
    %126 = arith.mulf %125, %124 : vector<8x64xf32>
    %127 = arith.mulf %114, %126 : vector<8x64xf32>
    %c0_64 = arith.constant 0 : index
    %c0_65 = arith.constant 0 : index
    %128 = vector.load %arg15[%c0_64, %c0_65] : memref<64x32xf32, #tpu.memory_space<vmem>>, vector<64x32xf32>
    %cst_66 = arith.constant dense<0.000000e+00> : vector<8x32xf32>
    %129 = tpu.matmul %127, %128, %cst_66 {dimension_numbers = #tpu.dot_dimension_numbers<[1], [0], [0], [1], [0, 0, 1, 1], [], []>} : vector<8x64xf32>, vector<64x32xf32>, vector<8x32xf32> -> vector<8x32xf32>
    %c0_67 = arith.constant 0 : index
    %c0_68 = arith.constant 0 : index
    %130 = vector.load %arg16[%c0_67, %c0_68] : memref<1x32xf32, #tpu.memory_space<vmem>>, vector<1x32xf32>
    %131 = vector.broadcast %130 : vector<1x32xf32> to vector<8x32xf32>
    %132 = arith.addf %129, %131 : vector<8x32xf32>
    %133 = arith.addf %132, %109 : vector<8x32xf32>
    %c0_69 = arith.constant 0 : index
    %c0_70 = arith.constant 0 : index
    %134 = vector.load %arg17[%c0_69, %c0_70] : memref<1x32xf32, #tpu.memory_space<vmem>>, vector<1x32xf32>
    %c0_71 = arith.constant 0 : index
    %c0_72 = arith.constant 0 : index
    %135 = vector.load %arg18[%c0_71, %c0_72] : memref<1x32xf32, #tpu.memory_space<vmem>>, vector<1x32xf32>
    %cst_73 = arith.constant dense<0.000000e+00> : vector<8xf32>
    %136 = vector.multi_reduction <add>, %133, %cst_73 [1] : vector<8x32xf32> to vector<8xf32>
    %137 = vector.shape_cast %136 : vector<8xf32> to vector<8x1xf32>
    %cst_74 = arith.constant 3.200000e+01 : f32
    %138 = vector.broadcast %cst_74 : f32 to vector<8x1xf32>
    %139 = arith.divf %137, %138 : vector<8x1xf32>
    %140 = vector.broadcast %139 : vector<8x1xf32> to vector<8x32xf32>
    %141 = arith.subf %133, %140 : vector<8x32xf32>
    %142 = arith.mulf %141, %141 : vector<8x32xf32>
    %cst_75 = arith.constant dense<0.000000e+00> : vector<8xf32>
    %143 = vector.multi_reduction <add>, %142, %cst_75 [1] : vector<8x32xf32> to vector<8xf32>
    %144 = vector.shape_cast %143 : vector<8xf32> to vector<8x1xf32>
    %cst_76 = arith.constant 3.200000e+01 : f32
    %145 = vector.broadcast %cst_76 : f32 to vector<8x1xf32>
    %146 = arith.divf %144, %145 : vector<8x1xf32>
    %cst_77 = arith.constant 9.99999996E-13 : f32
    %147 = vector.broadcast %cst_77 : f32 to vector<8x1xf32>
    %148 = arith.addf %146, %147 : vector<8x1xf32>
    %149 = math.rsqrt %148 : vector<8x1xf32>
    %150 = vector.broadcast %149 : vector<8x1xf32> to vector<8x32xf32>
    %151 = arith.mulf %141, %150 : vector<8x32xf32>
    %152 = vector.broadcast %134 : vector<1x32xf32> to vector<8x32xf32>
    %153 = arith.mulf %151, %152 : vector<8x32xf32>
    %154 = vector.broadcast %135 : vector<1x32xf32> to vector<8x32xf32>
    %155 = arith.addf %153, %154 : vector<8x32xf32>
    %c0_78 = arith.constant 0 : index
    %c0_79 = arith.constant 0 : index
    %156 = vector.load %arg7[%c0_78, %c0_79] : memref<32x96xf32, #tpu.memory_space<vmem>>, vector<32x96xf32>
    %cst_80 = arith.constant dense<0.000000e+00> : vector<8x96xf32>
    %157 = tpu.matmul %155, %156, %cst_80 {dimension_numbers = #tpu.dot_dimension_numbers<[1], [0], [0], [1], [0, 0, 1, 1], [], []>} : vector<8x32xf32>, vector<32x96xf32>, vector<8x96xf32> -> vector<8x96xf32>
    %c0_81 = arith.constant 0 : index
    %c0_82 = arith.constant 0 : index
    %158 = vector.load %arg8[%c0_81, %c0_82] : memref<1x96xf32, #tpu.memory_space<vmem>>, vector<1x96xf32>
    %159 = vector.broadcast %158 : vector<1x96xf32> to vector<8x96xf32>
    %160 = arith.addf %157, %159 : vector<8x96xf32>
    %161 = vector.extract_strided_slice %160 {offsets = [0, 0], sizes = [8, 16], strides = [1, 1]} : vector<8x96xf32> to vector<8x16xf32>
    %162 = vector.extract_strided_slice %160 {offsets = [0, 32], sizes = [8, 16], strides = [1, 1]} : vector<8x96xf32> to vector<8x16xf32>
    %163 = vector.extract_strided_slice %160 {offsets = [0, 64], sizes = [8, 16], strides = [1, 1]} : vector<8x96xf32> to vector<8x16xf32>
    %cst_83 = arith.constant dense<0.000000e+00> : vector<8x8xf32>
    %164 = tpu.matmul %161, %162, %cst_83 {dimension_numbers = #tpu.dot_dimension_numbers<[1], [1], [0], [0], [0, 0, 1, 0], [], []>} : vector<8x16xf32>, vector<8x16xf32>, vector<8x8xf32> -> vector<8x8xf32>
    %cst_84 = arith.constant 2.500000e-01 : f32
    %165 = vector.broadcast %cst_84 : f32 to vector<8x8xf32>
    %166 = arith.mulf %164, %165 : vector<8x8xf32>
    %167 = vector.broadcast %33 : vector<1x8xf32> to vector<8x8xf32>
    %168 = arith.addf %166, %167 : vector<8x8xf32>
    %cst_85 = arith.constant dense<0xFF800000> : vector<8xf32>
    %169 = vector.multi_reduction <maximumf>, %168, %cst_85 [1] : vector<8x8xf32> to vector<8xf32>
    %cst_86 = arith.constant 0xFF800000 : f32
    %170 = vector.broadcast %cst_86 : f32 to vector<8xf32>
    %171 = arith.maximumf %170, %169 : vector<8xf32>
    %172 = vector.shape_cast %171 : vector<8xf32> to vector<8x1xf32>
    %173 = vector.broadcast %172 : vector<8x1xf32> to vector<8x8xf32>
    %174 = arith.subf %168, %173 : vector<8x8xf32>
    %175 = math.exp %174 : vector<8x8xf32>
    %cst_87 = arith.constant dense<0.000000e+00> : vector<8xf32>
    %176 = vector.multi_reduction <add>, %175, %cst_87 [1] : vector<8x8xf32> to vector<8xf32>
    %177 = vector.shape_cast %176 : vector<8xf32> to vector<8x1xf32>
    %178 = vector.broadcast %177 : vector<8x1xf32> to vector<8x8xf32>
    %179 = arith.divf %175, %178 : vector<8x8xf32>
    %cst_88 = arith.constant dense<0.000000e+00> : vector<8x16xf32>
    %180 = tpu.matmul %179, %163, %cst_88 {dimension_numbers = #tpu.dot_dimension_numbers<[1], [0], [0], [1], [0, 0, 1, 1], [], []>} : vector<8x8xf32>, vector<8x16xf32>, vector<8x16xf32> -> vector<8x16xf32>
    %c0_89 = arith.constant 0 : index
    %c0_90 = arith.constant 0 : index
    %181 = vector.load %arg22[%c0_89, %c0_90] : memref<8x32xf32, #tpu.memory_space<vmem>>, vector<8x16xf32>
    tpu.vector_store %arg22[%c0_89, %c0_90], %180 {strides = array<i32>} : memref<8x32xf32, #tpu.memory_space<vmem>>, vector<8x16xf32>,
    %182 = vector.extract_strided_slice %160 {offsets = [0, 16], sizes = [8, 16], strides = [1, 1]} : vector<8x96xf32> to vector<8x16xf32>
    %183 = vector.extract_strided_slice %160 {offsets = [0, 48], sizes = [8, 16], strides = [1, 1]} : vector<8x96xf32> to vector<8x16xf32>
    %184 = vector.extract_strided_slice %160 {offsets = [0, 80], sizes = [8, 16], strides = [1, 1]} : vector<8x96xf32> to vector<8x16xf32>
    %cst_91 = arith.constant dense<0.000000e+00> : vector<8x8xf32>
    %185 = tpu.matmul %182, %183, %cst_91 {dimension_numbers = #tpu.dot_dimension_numbers<[1], [1], [0], [0], [0, 0, 1, 0], [], []>} : vector<8x16xf32>, vector<8x16xf32>, vector<8x8xf32> -> vector<8x8xf32>
    %cst_92 = arith.constant 2.500000e-01 : f32
    %186 = vector.broadcast %cst_92 : f32 to vector<8x8xf32>
    %187 = arith.mulf %185, %186 : vector<8x8xf32>
    %188 = vector.broadcast %33 : vector<1x8xf32> to vector<8x8xf32>
    %189 = arith.addf %187, %188 : vector<8x8xf32>
    %cst_93 = arith.constant dense<0xFF800000> : vector<8xf32>
    %190 = vector.multi_reduction <maximumf>, %189, %cst_93 [1] : vector<8x8xf32> to vector<8xf32>
    %cst_94 = arith.constant 0xFF800000 : f32
    %191 = vector.broadcast %cst_94 : f32 to vector<8xf32>
    %192 = arith.maximumf %191, %190 : vector<8xf32>
    %193 = vector.shape_cast %192 : vector<8xf32> to vector<8x1xf32>
    %194 = vector.broadcast %193 : vector<8x1xf32> to vector<8x8xf32>
    %195 = arith.subf %189, %194 : vector<8x8xf32>
    %196 = math.exp %195 : vector<8x8xf32>
    %cst_95 = arith.constant dense<0.000000e+00> : vector<8xf32>
    %197 = vector.multi_reduction <add>, %196, %cst_95 [1] : vector<8x8xf32> to vector<8xf32>
    %198 = vector.shape_cast %197 : vector<8xf32> to vector<8x1xf32>
    %199 = vector.broadcast %198 : vector<8x1xf32> to vector<8x8xf32>
    %200 = arith.divf %196, %199 : vector<8x8xf32>
    %cst_96 = arith.constant dense<0.000000e+00> : vector<8x16xf32>
    %201 = tpu.matmul %200, %184, %cst_96 {dimension_numbers = #tpu.dot_dimension_numbers<[1], [0], [0], [1], [0, 0, 1, 1], [], []>} : vector<8x8xf32>, vector<8x16xf32>, vector<8x16xf32> -> vector<8x16xf32>
    %c0_97 = arith.constant 0 : index
    %c16_98 = arith.constant 16 : index
    %202 = vector.load %arg22[%c0_97, %c16_98] : memref<8x32xf32, #tpu.memory_space<vmem>>, vector<8x16xf32>
    tpu.vector_store %arg22[%c0_97, %c16_98], %201 {strides = array<i32>} : memref<8x32xf32, #tpu.memory_space<vmem>>, vector<8x16xf32>,
    %c0_99 = arith.constant 0 : index
    %c0_100 = arith.constant 0 : index
    %203 = vector.load %arg22[%c0_99, %c0_100] : memref<8x32xf32, #tpu.memory_space<vmem>>, vector<8x32xf32>
    %c0_101 = arith.constant 0 : index
    %c0_102 = arith.constant 0 : index
    %204 = vector.load %arg9[%c0_101, %c0_102] : memref<32x32xf32, #tpu.memory_space<vmem>>, vector<32x32xf32>
    %cst_103 = arith.constant dense<0.000000e+00> : vector<8x32xf32>
    %205 = tpu.matmul %203, %204, %cst_103 {dimension_numbers = #tpu.dot_dimension_numbers<[1], [0], [0], [1], [0, 0, 1, 1], [], []>} : vector<8x32xf32>, vector<32x32xf32>, vector<8x32xf32> -> vector<8x32xf32>
    %c0_104 = arith.constant 0 : index
    %c0_105 = arith.constant 0 : index
    %206 = vector.load %arg10[%c0_104, %c0_105] : memref<1x32xf32, #tpu.memory_space<vmem>>, vector<1x32xf32>
    %207 = vector.broadcast %206 : vector<1x32xf32> to vector<8x32xf32>
    %208 = arith.addf %205, %207 : vector<8x32xf32>
    %209 = arith.addf %208, %155 : vector<8x32xf32>
    %c0_106 = arith.constant 0 : index
    %c0_107 = arith.constant 0 : index
    %210 = vector.load %arg11[%c0_106, %c0_107] : memref<1x32xf32, #tpu.memory_space<vmem>>, vector<1x32xf32>
    %c0_108 = arith.constant 0 : index
    %c0_109 = arith.constant 0 : index
    %211 = vector.load %arg12[%c0_108, %c0_109] : memref<1x32xf32, #tpu.memory_space<vmem>>, vector<1x32xf32>
    %cst_110 = arith.constant dense<0.000000e+00> : vector<8xf32>
    %212 = vector.multi_reduction <add>, %209, %cst_110 [1] : vector<8x32xf32> to vector<8xf32>
    %213 = vector.shape_cast %212 : vector<8xf32> to vector<8x1xf32>
    %cst_111 = arith.constant 3.200000e+01 : f32
    %214 = vector.broadcast %cst_111 : f32 to vector<8x1xf32>
    %215 = arith.divf %213, %214 : vector<8x1xf32>
    %216 = vector.broadcast %215 : vector<8x1xf32> to vector<8x32xf32>
    %217 = arith.subf %209, %216 : vector<8x32xf32>
    %218 = arith.mulf %217, %217 : vector<8x32xf32>
    %cst_112 = arith.constant dense<0.000000e+00> : vector<8xf32>
    %219 = vector.multi_reduction <add>, %218, %cst_112 [1] : vector<8x32xf32> to vector<8xf32>
    %220 = vector.shape_cast %219 : vector<8xf32> to vector<8x1xf32>
    %cst_113 = arith.constant 3.200000e+01 : f32
    %221 = vector.broadcast %cst_113 : f32 to vector<8x1xf32>
    %222 = arith.divf %220, %221 : vector<8x1xf32>
    %cst_114 = arith.constant 9.99999996E-13 : f32
    %223 = vector.broadcast %cst_114 : f32 to vector<8x1xf32>
    %224 = arith.addf %222, %223 : vector<8x1xf32>
    %225 = math.rsqrt %224 : vector<8x1xf32>
    %226 = vector.broadcast %225 : vector<8x1xf32> to vector<8x32xf32>
    %227 = arith.mulf %217, %226 : vector<8x32xf32>
    %228 = vector.broadcast %210 : vector<1x32xf32> to vector<8x32xf32>
    %229 = arith.mulf %227, %228 : vector<8x32xf32>
    %230 = vector.broadcast %211 : vector<1x32xf32> to vector<8x32xf32>
    %231 = arith.addf %229, %230 : vector<8x32xf32>
    %c0_115 = arith.constant 0 : index
    %c0_116 = arith.constant 0 : index
    %232 = vector.load %arg13[%c0_115, %c0_116] : memref<32x64xf32, #tpu.memory_space<vmem>>, vector<32x64xf32>
    %cst_117 = arith.constant dense<0.000000e+00> : vector<8x64xf32>
    %233 = tpu.matmul %231, %232, %cst_117 {dimension_numbers = #tpu.dot_dimension_numbers<[1], [0], [0], [1], [0, 0, 1, 1], [], []>} : vector<8x32xf32>, vector<32x64xf32>, vector<8x64xf32> -> vector<8x64xf32>
    %c0_118 = arith.constant 0 : index
    %c0_119 = arith.constant 0 : index
    %234 = vector.load %arg14[%c0_118, %c0_119] : memref<1x64xf32, #tpu.memory_space<vmem>>, vector<1x64xf32>
    %235 = vector.broadcast %234 : vector<1x64xf32> to vector<8x64xf32>
    %236 = arith.addf %233, %235 : vector<8x64xf32>
    %237 = arith.mulf %236, %236 : vector<8x64xf32>
    %238 = arith.mulf %236, %237 : vector<8x64xf32>
    %cst_120 = arith.constant 4.471500e-02 : f32
    %239 = vector.broadcast %cst_120 : f32 to vector<8x64xf32>
    %240 = arith.mulf %239, %238 : vector<8x64xf32>
    %241 = arith.addf %236, %240 : vector<8x64xf32>
    %cst_121 = arith.constant 0.797884583 : f32
    %242 = vector.broadcast %cst_121 : f32 to vector<8x64xf32>
    %243 = arith.mulf %242, %241 : vector<8x64xf32>
    %244 = math.tanh %243 : vector<8x64xf32>
    %cst_122 = arith.constant 1.000000e+00 : f32
    %245 = vector.broadcast %cst_122 : f32 to vector<8x64xf32>
    %246 = arith.addf %245, %244 : vector<8x64xf32>
    %cst_123 = arith.constant 5.000000e-01 : f32
    %247 = vector.broadcast %cst_123 : f32 to vector<8x64xf32>
    %248 = arith.mulf %247, %246 : vector<8x64xf32>
    %249 = arith.mulf %236, %248 : vector<8x64xf32>
    %c0_124 = arith.constant 0 : index
    %c0_125 = arith.constant 0 : index
    %250 = vector.load %arg15[%c0_124, %c0_125] : memref<64x32xf32, #tpu.memory_space<vmem>>, vector<64x32xf32>
    %cst_126 = arith.constant dense<0.000000e+00> : vector<8x32xf32>
    %251 = tpu.matmul %249, %250, %cst_126 {dimension_numbers = #tpu.dot_dimension_numbers<[1], [0], [0], [1], [0, 0, 1, 1], [], []>} : vector<8x64xf32>, vector<64x32xf32>, vector<8x32xf32> -> vector<8x32xf32>
    %c0_127 = arith.constant 0 : index
    %c0_128 = arith.constant 0 : index
    %252 = vector.load %arg16[%c0_127, %c0_128] : memref<1x32xf32, #tpu.memory_space<vmem>>, vector<1x32xf32>
    %253 = vector.broadcast %252 : vector<1x32xf32> to vector<8x32xf32>
    %254 = arith.addf %251, %253 : vector<8x32xf32>
    %255 = arith.addf %254, %231 : vector<8x32xf32>
    %c0_129 = arith.constant 0 : index
    %c0_130 = arith.constant 0 : index
    %256 = vector.load %arg17[%c0_129, %c0_130] : memref<1x32xf32, #tpu.memory_space<vmem>>, vector<1x32xf32>
    %c0_131 = arith.constant 0 : index
    %c0_132 = arith.constant 0 : index
    %257 = vector.load %arg18[%c0_131, %c0_132] : memref<1x32xf32, #tpu.memory_space<vmem>>, vector<1x32xf32>
    %cst_133 = arith.constant dense<0.000000e+00> : vector<8xf32>
    %258 = vector.multi_reduction <add>, %255, %cst_133 [1] : vector<8x32xf32> to vector<8xf32>
    %259 = vector.shape_cast %258 : vector<8xf32> to vector<8x1xf32>
    %cst_134 = arith.constant 3.200000e+01 : f32
    %260 = vector.broadcast %cst_134 : f32 to vector<8x1xf32>
    %261 = arith.divf %259, %260 : vector<8x1xf32>
    %262 = vector.broadcast %261 : vector<8x1xf32> to vector<8x32xf32>
    %263 = arith.subf %255, %262 : vector<8x32xf32>
    %264 = arith.mulf %263, %263 : vector<8x32xf32>
    %cst_135 = arith.constant dense<0.000000e+00> : vector<8xf32>
    %265 = vector.multi_reduction <add>, %264, %cst_135 [1] : vector<8x32xf32> to vector<8xf32>
    %266 = vector.shape_cast %265 : vector<8xf32> to vector<8x1xf32>
    %cst_136 = arith.constant 3.200000e+01 : f32
    %267 = vector.broadcast %cst_136 : f32 to vector<8x1xf32>
    %268 = arith.divf %266, %267 : vector<8x1xf32>
    %cst_137 = arith.constant 9.99999996E-13 : f32
    %269 = vector.broadcast %cst_137 : f32 to vector<8x1xf32>
    %270 = arith.addf %268, %269 : vector<8x1xf32>
    %271 = math.rsqrt %270 : vector<8x1xf32>
    %272 = vector.broadcast %271 : vector<8x1xf32> to vector<8x32xf32>
    %273 = arith.mulf %263, %272 : vector<8x32xf32>
    %274 = vector.broadcast %256 : vector<1x32xf32> to vector<8x32xf32>
    %275 = arith.mulf %273, %274 : vector<8x32xf32>
    %276 = vector.broadcast %257 : vector<1x32xf32> to vector<8x32xf32>
    %277 = arith.addf %275, %276 : vector<8x32xf32>
    %278 = vector.extract_strided_slice %277 {offsets = [0, 0], sizes = [1, 32], strides = [1, 1]} : vector<8x32xf32> to vector<1x32xf32>
    %c0_138 = arith.constant 0 : index
    %c0_139 = arith.constant 0 : index
    %279 = vector.load %arg19[%c0_138, %c0_139] : memref<32x1xf32, #tpu.memory_space<vmem>>, vector<32x1xf32>
    %cst_140 = arith.constant dense<0.000000e+00> : vector<1x1xf32>
    %280 = tpu.matmul %278, %279, %cst_140 {dimension_numbers = #tpu.dot_dimension_numbers<[1], [0], [0], [1], [0, 0, 1, 1], [], []>} : vector<1x32xf32>, vector<32x1xf32>, vector<1x1xf32> -> vector<1x1xf32>
    %c0_141 = arith.constant 0 : index
    %c0_142 = arith.constant 0 : index
    %281 = vector.load %arg20[%c0_141, %c0_142] : memref<1x1xf32, #tpu.memory_space<vmem>>, vector<1x1xf32>
    %282 = arith.addf %280, %281 : vector<1x1xf32>
    %283 = arith.negf %282 : vector<1x1xf32>
    %284 = math.exp %283 : vector<1x1xf32>
    %cst_143 = arith.constant 1.000000e+00 : f32
    %285 = vector.broadcast %cst_143 : f32 to vector<1x1xf32>
    %286 = arith.addf %285, %284 : vector<1x1xf32>
    %287 = arith.divf %285, %286 : vector<1x1xf32>
    %c0_144 = arith.constant 0 : index
    %c0_145 = arith.constant 0 : index
    %c0_146 = arith.constant 0 : index
    %288 = vector.load %arg21[%c0_144, %c0_145, %c0_146] : memref<1x1x1xf32, #tpu.memory_space<vmem>>, vector<1x1x1xf32>
    %289 = vector.shape_cast %288 : vector<1x1x1xf32> to vector<1x1xf32>
    %290 = vector.shape_cast %287 : vector<1x1xf32> to vector<1x1x1xf32>
    tpu.vector_store %arg21[%c0_144, %c0_145, %c0_146], %290 {strides = array<i32>} : memref<1x1x1xf32, #tpu.memory_space<vmem>>, vector<1x1x1xf32>,
    return
  }
  func.func @transform_0(%arg0: i32) -> (i32, i32) {
    %c0_i32 = arith.constant 0 : i32
    %c0_i32_0 = arith.constant 0 : i32
    return %arg0, %c0_i32 : i32, i32
  }
  func.func @transform_1(%arg0: i32) -> (i32, i32, i32) {
    %c0_i32 = arith.constant 0 : i32
    %c0_i32_0 = arith.constant 0 : i32
    %c0_i32_1 = arith.constant 0 : i32
    return %arg0, %c0_i32, %c0_i32_0 : i32, i32, i32
  }
  func.func @transform_2(%arg0: i32) -> (i32, i32) {
    %c0_i32 = arith.constant 0 : i32
    %c0_i32_0 = arith.constant 0 : i32
    %c0_i32_1 = arith.constant 0 : i32
    return %c0_i32, %c0_i32_0 : i32, i32
  }
  func.func @transform_3(%arg0: i32) -> (i32, i32) {
    %c0_i32 = arith.constant 0 : i32
    %c0_i32_0 = arith.constant 0 : i32
    %c0_i32_1 = arith.constant 0 : i32
    return %c0_i32, %c0_i32_0 : i32, i32
  }
  func.func @transform_4(%arg0: i32) -> (i32, i32) {
    %c0_i32 = arith.constant 0 : i32
    %c0_i32_0 = arith.constant 0 : i32
    %c0_i32_1 = arith.constant 0 : i32
    return %c0_i32, %c0_i32_0 : i32, i32
  }
  func.func @transform_5(%arg0: i32) -> (i32, i32) {
    %c0_i32 = arith.constant 0 : i32
    %c0_i32_0 = arith.constant 0 : i32
    %c0_i32_1 = arith.constant 0 : i32
    return %c0_i32, %c0_i32_0 : i32, i32
  }
  func.func @transform_6(%arg0: i32) -> (i32, i32) {
    %c0_i32 = arith.constant 0 : i32
    %c0_i32_0 = arith.constant 0 : i32
    %c0_i32_1 = arith.constant 0 : i32
    return %c0_i32, %c0_i32_0 : i32, i32
  }
  func.func @transform_7(%arg0: i32) -> (i32, i32) {
    %c0_i32 = arith.constant 0 : i32
    %c0_i32_0 = arith.constant 0 : i32
    %c0_i32_1 = arith.constant 0 : i32
    return %c0_i32, %c0_i32_0 : i32, i32
  }
  func.func @transform_8(%arg0: i32) -> (i32, i32) {
    %c0_i32 = arith.constant 0 : i32
    %c0_i32_0 = arith.constant 0 : i32
    %c0_i32_1 = arith.constant 0 : i32
    return %c0_i32, %c0_i32_0 : i32, i32
  }
  func.func @transform_9(%arg0: i32) -> (i32, i32) {
    %c0_i32 = arith.constant 0 : i32
    %c0_i32_0 = arith.constant 0 : i32
    %c0_i32_1 = arith.constant 0 : i32
    return %c0_i32, %c0_i32_0 : i32, i32
  }
  func.func @transform_10(%arg0: i32) -> (i32, i32) {
    %c0_i32 = arith.constant 0 : i32
    %c0_i32_0 = arith.constant 0 : i32
    %c0_i32_1 = arith.constant 0 : i32
    return %c0_i32, %c0_i32_0 : i32, i32
  }
  func.func @transform_11(%arg0: i32) -> (i32, i32) {
    %c0_i32 = arith.constant 0 : i32
    %c0_i32_0 = arith.constant 0 : i32
    %c0_i32_1 = arith.constant 0 : i32
    return %c0_i32, %c0_i32_0 : i32, i32
  }
  func.func @transform_12(%arg0: i32) -> (i32, i32) {
    %c0_i32 = arith.constant 0 : i32
    %c0_i32_0 = arith.constant 0 : i32
    %c0_i32_1 = arith.constant 0 : i32
    return %c0_i32, %c0_i32_0 : i32, i32
  }
  func.func @transform_13(%arg0: i32) -> (i32, i32) {
    %c0_i32 = arith.constant 0 : i32
    %c0_i32_0 = arith.constant 0 : i32
    %c0_i32_1 = arith.constant 0 : i32
    return %c0_i32, %c0_i32_0 : i32, i32
  }
  func.func @transform_14(%arg0: i32) -> (i32, i32) {
    %c0_i32 = arith.constant 0 : i32
    %c0_i32_0 = arith.constant 0 : i32
    %c0_i32_1 = arith.constant 0 : i32
    return %c0_i32, %c0_i32_0 : i32, i32
  }
  func.func @transform_15(%arg0: i32) -> (i32, i32) {
    %c0_i32 = arith.constant 0 : i32
    %c0_i32_0 = arith.constant 0 : i32
    %c0_i32_1 = arith.constant 0 : i32
    return %c0_i32, %c0_i32_0 : i32, i32
  }
  func.func @transform_16(%arg0: i32) -> (i32, i32) {
    %c0_i32 = arith.constant 0 : i32
    %c0_i32_0 = arith.constant 0 : i32
    %c0_i32_1 = arith.constant 0 : i32
    return %c0_i32, %c0_i32_0 : i32, i32
  }
  func.func @transform_17(%arg0: i32) -> (i32, i32) {
    %c0_i32 = arith.constant 0 : i32
    %c0_i32_0 = arith.constant 0 : i32
    %c0_i32_1 = arith.constant 0 : i32
    return %c0_i32, %c0_i32_0 : i32, i32
  }
  func.func @transform_18(%arg0: i32) -> (i32, i32) {
    %c0_i32 = arith.constant 0 : i32
    %c0_i32_0 = arith.constant 0 : i32
    %c0_i32_1 = arith.constant 0 : i32
    return %c0_i32, %c0_i32_0 : i32, i32
  }
  func.func @transform_19(%arg0: i32) -> (i32, i32) {
    %c0_i32 = arith.constant 0 : i32
    %c0_i32_0 = arith.constant 0 : i32
    %c0_i32_1 = arith.constant 0 : i32
    return %c0_i32, %c0_i32_0 : i32, i32
  }
  func.func @transform_20(%arg0: i32) -> (i32, i32, i32) {
    %c0_i32 = arith.constant 0 : i32
    %c0_i32_0 = arith.constant 0 : i32
    %c0_i32_1 = arith.constant 0 : i32
    return %arg0, %c0_i32, %c0_i32_0 : i32, i32, i32
  }
}

</mosaic_0001>

<llo_original>
// kernel: name_classifier_forward.1
$region0: #{name_classifier_forward.1}
  #allocation0 [shape = 'u32[]', space=smem, size = 0x4, offset = 0x4, fixed_abs, tag = 'smem constant byte address 0x4 - core index']
  #allocation1 [shape = 'u32[144,128]{1,0:T(1,128)}', space=vmem, size = 0x12000, scoped, tag = 'internal scratch']
  #allocation2 [shape = 'f32[8,32]{1,0:T(8,128)}', space=vmem, size = 0x1000, scoped, tag = 'scratch operand']
  #allocation3 [shape = 'f32[1,1]{1,0:T(1,128)S(1)}', space=vmem, size = 0x200, scoped, tag = 'scoped memory for name_classifier_forward.1']
  %s0 = inlined_call_operand.vmem [shape: f32[16,16], index: 0, kind: input, shape index: {}]
  %s1 = inlined_call_operand.vmem [shape: f32[2,1,8], index: 1, kind: input, shape index: {}]
  %s2 = inlined_call_operand.vmem [shape: f32[1,16], index: 2, kind: input, shape index: {}]
  %s3 = inlined_call_operand.vmem [shape: f32[1,16], index: 3, kind: input, shape index: {}]
  %s4 = inlined_call_operand.vmem [shape: f32[16,32], index: 4, kind: input, shape index: {}]
  %s5 = inlined_call_operand.vmem [shape: f32[1,32], index: 5, kind: input, shape index: {}]
  %s6 = inlined_call_operand.vmem [shape: f32[32,96], index: 6, kind: input, shape index: {}]
  %s7 = inlined_call_operand.vmem [shape: f32[1,96], index: 7, kind: input, shape index: {}]
  %s8 = inlined_call_operand.vmem [shape: f32[32,32], index: 8, kind: input, shape index: {}]
  %s9 = inlined_call_operand.vmem [shape: f32[1,32], index: 9, kind: input, shape index: {}]
  %s10 = inlined_call_operand.vmem [shape: f32[1,32], index: 10, kind: input, shape index: {}]
  %s11 = inlined_call_operand.vmem [shape: f32[1,32], index: 11, kind: input, shape index: {}]
  %s12 = inlined_call_operand.vmem [shape: f32[32,64], index: 12, kind: input, shape index: {}]
  %s13 = inlined_call_operand.vmem [shape: f32[1,64], index: 13, kind: input, shape index: {}]
  %s14 = inlined_call_operand.vmem [shape: f32[64,32], index: 14, kind: input, shape index: {}]
  %s15 = inlined_call_operand.vmem [shape: f32[1,32], index: 15, kind: input, shape index: {}]
  %s16 = inlined_call_operand.vmem [shape: f32[1,32], index: 16, kind: input, shape index: {}]
  %s17 = inlined_call_operand.vmem [shape: f32[1,32], index: 17, kind: input, shape index: {}]
  %s18 = inlined_call_operand.vmem [shape: f32[32,1], index: 18, kind: input, shape index: {}]
  %s19 = inlined_call_operand.<no memory space> [shape: f32[1,1], index: 19, kind: input, shape index: {}]
  %s20 = inlined_call_operand.vmem [shape: f32[2,1,1], index: 20, kind: output, shape index: {}]
  %s21 = sld [smem:[#allocation0]]
  $region113: #{name_classifier_forward.1} parent=0
    _
  %s23 = ssub.s32 1, %s21
  %s24 = scalar_select 0, %s23, %s21
  %v25 = vstv %s19
  %26 = vst [vmem:[#allocation3] sm:$0x1] %v25
  loop: start=0, step=1, limit=4
  $region2: #{name_classifier_forward.1} parent=0 // loop_pre_header
    _
  $region3: #{name_classifier_forward.1} parent=0 // loop_header
    %s28 = sphi 0, %s32
    %p29 = scmp.ge.s32.totalorder %s28, 4
    %s38 = sphi 0, %s40
    %s41 = sphi 0, %s38
    %s42 = sphi 0, %s41
    %s58 = sphi 0, %s42
    %s64 = sphi 0, %s66
    %s67 = sphi 0, %s64
    %s68 = sphi 0, %s67
    %s84 = sphi 0, %s68
    %s88 = sphi 0, %s88
    %s90 = sphi 0, %s88
    %s91 = sphi 0, %s90
    %s105 = sphi 0, %s91
    %s109 = sphi 0, %s109
    %s111 = sphi 0, %s109
    %s112 = sphi 0, %s111
    %s126 = sphi 0, %s112
    %s130 = sphi 0, %s130
    %s132 = sphi 0, %s130
    %s133 = sphi 0, %s132
    %s147 = sphi 0, %s133
    %s151 = sphi 0, %s151
    %s153 = sphi 0, %s151
    %s154 = sphi 0, %s153
    %s168 = sphi 0, %s154
    %s172 = sphi 0, %s172
    %s174 = sphi 0, %s172
    %s175 = sphi 0, %s174
    %s189 = sphi 0, %s175
    %s193 = sphi 0, %s193
    %s195 = sphi 0, %s193
    %s196 = sphi 0, %s195
    %s210 = sphi 0, %s196
    %s214 = sphi 0, %s214
    %s216 = sphi 0, %s214
    %s217 = sphi 0, %s216
    %s231 = sphi 0, %s217
    %s235 = sphi 0, %s235
    %s237 = sphi 0, %s235
    %s238 = sphi 0, %s237
    %s252 = sphi 0, %s238
    %s256 = sphi 0, %s256
    %s258 = sphi 0, %s256
    %s259 = sphi 0, %s258
    %s273 = sphi 0, %s259
    %s277 = sphi 0, %s277
    %s279 = sphi 0, %s277
    %s280 = sphi 0, %s279
    %s294 = sphi 0, %s280
    %s298 = sphi 0, %s298
    %s300 = sphi 0, %s298
    %s301 = sphi 0, %s300
    %s315 = sphi 0, %s301
    %s319 = sphi 0, %s319
    %s321 = sphi 0, %s319
    %s322 = sphi 0, %s321
    %s336 = sphi 0, %s322
    %s340 = sphi 0, %s340
    %s342 = sphi 0, %s340
    %s343 = sphi 0, %s342
    %s357 = sphi 0, %s343
    %s361 = sphi 0, %s361
    %s363 = sphi 0, %s361
    %s364 = sphi 0, %s363
    %s378 = sphi 0, %s364
    %s382 = sphi 0, %s382
    %s384 = sphi 0, %s382
    %s385 = sphi 0, %s384
    %s399 = sphi 0, %s385
    %s403 = sphi 0, %s403
    %s405 = sphi 0, %s403
    %s406 = sphi 0, %s405
    %s420 = sphi 0, %s406
    %s424 = sphi 0, %s424
    %s426 = sphi 0, %s424
    %s427 = sphi 0, %s426
    %s441 = sphi 0, %s427
    %s445 = sphi 0, %s445
    %s447 = sphi 0, %s445
    %s448 = sphi 0, %s447
    %s462 = sphi 0, %s448
    %s468 = sphi 0, %s470
    %s471 = sphi 0, %s468
    %s472 = sphi 0, %s471
    %s488 = sphi 0, %s472
  $region4: #{name_classifier_forward.1} parent=0 // loop_header_branch
    %31 = sbr.rel (%p29) target = $region8
  $region5: #{name_classifier_forward.1} parent=0 // loop_body
    %s33 = ssub.s32 %s28, 1
    %s34 = ssub.s32 %s28, 2
    %s35 = sadd.s32 %s28, 1
    %s36 = ssub.s32 %s28, %s35
    %p37 = scmp.eq.s32.totalorder %s36, 0
    %s39 = sadd.s32 %s38, 1
    %s40 = scalar_select %p37, %s38, %s39
    %p43 = pneg %p37
    %p44 = scmp.eq.s32.totalorder %s28, 1
    %p45 = por %p43, %p44
    %p46 = scmp.ne.s32.totalorder %s38, %s41
    %p47 = scmp.eq.s32.totalorder %s28, 0
    %p48 = por %p46, %p47
    %p49 = scmp.ne.s32.totalorder %s38, %s41
    %p50 = scmp.eq.s32.totalorder %s33, 1
    %p51 = por %p49, %p50
    %p52 = scmp.ne.s32.totalorder %s41, %s42
    %p53 = scmp.eq.s32.totalorder %s33, 0
    %p54 = por %p52, %p53
    %p55 = scmp.ne.s32.totalorder %s41, %s42
    %p56 = scmp.eq.s32.totalorder %s34, 1
    %p57 = por %p55, %p56
    %p59 = scmp.ne.s32.totalorder %s42, %s58
    %p60 = scmp.eq.s32.totalorder %s34, 0
    %p61 = por %p59, %p60
    %s62 = ssub.s32 %s28, %s35
    %p63 = scmp.eq.s32.totalorder %s62, 0
    %s65 = sadd.s32 %s64, 1
    %s66 = scalar_select %p63, %s64, %s65
    %p69 = pneg %p63
    %p70 = scmp.eq.s32.totalorder %s28, 1
    %p71 = por %p69, %p70
    %p72 = scmp.ne.s32.totalorder %s64, %s67
    %p73 = scmp.eq.s32.totalorder %s28, 0
    %p74 = por %p72, %p73
    %p75 = scmp.ne.s32.totalorder %s64, %s67
    %p76 = scmp.eq.s32.totalorder %s33, 1
    %p77 = por %p75, %p76
    %p78 = scmp.ne.s32.totalorder %s67, %s68
    %p79 = scmp.eq.s32.totalorder %s33, 0
    %p80 = por %p78, %p79
    %p81 = scmp.ne.s32.totalorder %s67, %s68
    %p82 = scmp.eq.s32.totalorder %s34, 1
    %p83 = por %p81, %p82
    %p85 = scmp.ne.s32.totalorder %s68, %s84
    %p86 = scmp.eq.s32.totalorder %s34, 0
    %p87 = por %p85, %p86
    %s89 = sadd.s32 %s88, 1
    %p92 = scmp.eq.s32.totalorder %s28, 1
    %p93 = scmp.ne.s32.totalorder %s88, %s90
    %p94 = scmp.eq.s32.totalorder %s28, 0
    %p95 = por %p93, %p94
    %p96 = scmp.ne.s32.totalorder %s88, %s90
    %p97 = scmp.eq.s32.totalorder %s33, 1
    %p98 = por %p96, %p97
    %p99 = scmp.ne.s32.totalorder %s90, %s91
    %p100 = scmp.eq.s32.totalorder %s33, 0
    %p101 = por %p99, %p100
    %p102 = scmp.ne.s32.totalorder %s90, %s91
    %p103 = scmp.eq.s32.totalorder %s34, 1
    %p104 = por %p102, %p103
    %p106 = scmp.ne.s32.totalorder %s91, %s105
    %p107 = scmp.eq.s32.totalorder %s34, 0
    %p108 = por %p106, %p107
    %s110 = sadd.s32 %s109, 1
    %p113 = scmp.eq.s32.totalorder %s28, 1
    %p114 = scmp.ne.s32.totalorder %s109, %s111
    %p115 = scmp.eq.s32.totalorder %s28, 0
    %p116 = por %p114, %p115
    %p117 = scmp.ne.s32.totalorder %s109, %s111
    %p118 = scmp.eq.s32.totalorder %s33, 1
    %p119 = por %p117, %p118
    %p120 = scmp.ne.s32.totalorder %s111, %s112
    %p121 = scmp.eq.s32.totalorder %s33, 0
    %p122 = por %p120, %p121
    %p123 = scmp.ne.s32.totalorder %s111, %s112
    %p124 = scmp.eq.s32.totalorder %s34, 1
    %p125 = por %p123, %p124
    %p127 = scmp.ne.s32.totalorder %s112, %s126
    %p128 = scmp.eq.s32.totalorder %s34, 0
    %p129 = por %p127, %p128
    %s131 = sadd.s32 %s130, 1
    %p134 = scmp.eq.s32.totalorder %s28, 1
    %p135 = scmp.ne.s32.totalorder %s130, %s132
    %p136 = scmp.eq.s32.totalorder %s28, 0
    %p137 = por %p135, %p136
    %p138 = scmp.ne.s32.totalorder %s130, %s132
    %p139 = scmp.eq.s32.totalorder %s33, 1
    %p140 = por %p138, %p139
    %p141 = scmp.ne.s32.totalorder %s132, %s133
    %p142 = scmp.eq.s32.totalorder %s33, 0
    %p143 = por %p141, %p142
    %p144 = scmp.ne.s32.totalorder %s132, %s133
    %p145 = scmp.eq.s32.totalorder %s34, 1
    %p146 = por %p144, %p145
    %p148 = scmp.ne.s32.totalorder %s133, %s147
    %p149 = scmp.eq.s32.totalorder %s34, 0
    %p150 = por %p148, %p149
    %s152 = sadd.s32 %s151, 1
    %p155 = scmp.eq.s32.totalorder %s28, 1
    %p156 = scmp.ne.s32.totalorder %s151, %s153
    %p157 = scmp.eq.s32.totalorder %s28, 0
    %p158 = por %p156, %p157
    %p159 = scmp.ne.s32.totalorder %s151, %s153
    %p160 = scmp.eq.s32.totalorder %s33, 1
    %p161 = por %p159, %p160
    %p162 = scmp.ne.s32.totalorder %s153, %s154
    %p163 = scmp.eq.s32.totalorder %s33, 0
    %p164 = por %p162, %p163
    %p165 = scmp.ne.s32.totalorder %s153, %s154
    %p166 = scmp.eq.s32.totalorder %s34, 1
    %p167 = por %p165, %p166
    %p169 = scmp.ne.s32.totalorder %s154, %s168
    %p170 = scmp.eq.s32.totalorder %s34, 0
    %p171 = por %p169, %p170
    %s173 = sadd.s32 %s172, 1
    %p176 = scmp.eq.s32.totalorder %s28, 1
    %p177 = scmp.ne.s32.totalorder %s172, %s174
    %p178 = scmp.eq.s32.totalorder %s28, 0
    %p179 = por %p177, %p178
    %p180 = scmp.ne.s32.totalorder %s172, %s174
    %p181 = scmp.eq.s32.totalorder %s33, 1
    %p182 = por %p180, %p181
    %p183 = scmp.ne.s32.totalorder %s174, %s175
    %p184 = scmp.eq.s32.totalorder %s33, 0
    %p185 = por %p183, %p184
    %p186 = scmp.ne.s32.totalorder %s174, %s175
    %p187 = scmp.eq.s32.totalorder %s34, 1
    %p188 = por %p186, %p187
    %p190 = scmp.ne.s32.totalorder %s175, %s189
    %p191 = scmp.eq.s32.totalorder %s34, 0
    %p192 = por %p190, %p191
    %s194 = sadd.s32 %s193, 1
    %p197 = scmp.eq.s32.totalorder %s28, 1
    %p198 = scmp.ne.s32.totalorder %s193, %s195
    %p199 = scmp.eq.s32.totalorder %s28, 0
    %p200 = por %p198, %p199
    %p201 = scmp.ne.s32.totalorder %s193, %s195
    %p202 = scmp.eq.s32.totalorder %s33, 1
    %p203 = por %p201, %p202
    %p204 = scmp.ne.s32.totalorder %s195, %s196
    %p205 = scmp.eq.s32.totalorder %s33, 0
    %p206 = por %p204, %p205
    %p207 = scmp.ne.s32.totalorder %s195, %s196
    %p208 = scmp.eq.s32.totalorder %s34, 1
    %p209 = por %p207, %p208
    %p211 = scmp.ne.s32.totalorder %s196, %s210
    %p212 = scmp.eq.s32.totalorder %s34, 0
    %p213 = por %p211, %p212
    %s215 = sadd.s32 %s214, 1
    %p218 = scmp.eq.s32.totalorder %s28, 1
    %p219 = scmp.ne.s32.totalorder %s214, %s216
    %p220 = scmp.eq.s32.totalorder %s28, 0
    %p221 = por %p219, %p220
    %p222 = scmp.ne.s32.totalorder %s214, %s216
    %p223 = scmp.eq.s32.totalorder %s33, 1
    %p224 = por %p222, %p223
    %p225 = scmp.ne.s32.totalorder %s216, %s217
    %p226 = scmp.eq.s32.totalorder %s33, 0
    %p227 = por %p225, %p226
    %p228 = scmp.ne.s32.totalorder %s216, %s217
    %p229 = scmp.eq.s32.totalorder %s34, 1
    %p230 = por %p228, %p229
    %p232 = scmp.ne.s32.totalorder %s217, %s231
    %p233 = scmp.eq.s32.totalorder %s34, 0
    %p234 = por %p232, %p233
    %s236 = sadd.s32 %s235, 1
    %p239 = scmp.eq.s32.totalorder %s28, 1
    %p240 = scmp.ne.s32.totalorder %s235, %s237
    %p241 = scmp.eq.s32.totalorder %s28, 0
    %p242 = por %p240, %p241
    %p243 = scmp.ne.s32.totalorder %s235, %s237
    %p244 = scmp.eq.s32.totalorder %s33, 1
    %p245 = por %p243, %p244
    %p246 = scmp.ne.s32.totalorder %s237, %s238
    %p247 = scmp.eq.s32.totalorder %s33, 0
    %p248 = por %p246, %p247
    %p249 = scmp.ne.s32.totalorder %s237, %s238
    %p250 = scmp.eq.s32.totalorder %s34, 1
    %p251 = por %p249, %p250
    %p253 = scmp.ne.s32.totalorder %s238, %s252
    %p254 = scmp.eq.s32.totalorder %s34, 0
    %p255 = por %p253, %p254
    %s257 = sadd.s32 %s256, 1
    %p260 = scmp.eq.s32.totalorder %s28, 1
    %p261 = scmp.ne.s32.totalorder %s256, %s258
    %p262 = scmp.eq.s32.totalorder %s28, 0
    %p263 = por %p261, %p262
    %p264 = scmp.ne.s32.totalorder %s256, %s258
    %p265 = scmp.eq.s32.totalorder %s33, 1
    %p266 = por %p264, %p265
    %p267 = scmp.ne.s32.totalorder %s258, %s259
    %p268 = scmp.eq.s32.totalorder %s33, 0
    %p269 = por %p267, %p268
    %p270 = scmp.ne.s32.totalorder %s258, %s259
    %p271 = scmp.eq.s32.totalorder %s34, 1
    %p272 = por %p270, %p271
    %p274 = scmp.ne.s32.totalorder %s259, %s273
    %p275 = scmp.eq.s32.totalorder %s34, 0
    %p276 = por %p274, %p275
    %s278 = sadd.s32 %s277, 1
    %p281 = scmp.eq.s32.totalorder %s28, 1
    %p282 = scmp.ne.s32.totalorder %s277, %s279
    %p283 = scmp.eq.s32.totalorder %s28, 0
    %p284 = por %p282, %p283
    %p285 = scmp.ne.s32.totalorder %s277, %s279
    %p286 = scmp.eq.s32.totalorder %s33, 1
    %p287 = por %p285, %p286
    %p288 = scmp.ne.s32.totalorder %s279, %s280
    %p289 = scmp.eq.s32.totalorder %s33, 0
    %p290 = por %p288, %p289
    %p291 = scmp.ne.s32.totalorder %s279, %s280
    %p292 = scmp.eq.s32.totalorder %s34, 1
    %p293 = por %p291, %p292
    %p295 = scmp.ne.s32.totalorder %s280, %s294
    %p296 = scmp.eq.s32.totalorder %s34, 0
    %p297 = por %p295, %p296
    %s299 = sadd.s32 %s298, 1
    %p302 = scmp.eq.s32.totalorder %s28, 1
    %p303 = scmp.ne.s32.totalorder %s298, %s300
    %p304 = scmp.eq.s32.totalorder %s28, 0
    %p305 = por %p303, %p304
    %p306 = scmp.ne.s32.totalorder %s298, %s300
    %p307 = scmp.eq.s32.totalorder %s33, 1
    %p308 = por %p306, %p307
    %p309 = scmp.ne.s32.totalorder %s300, %s301
    %p310 = scmp.eq.s32.totalorder %s33, 0
    %p311 = por %p309, %p310
    %p312 = scmp.ne.s32.totalorder %s300, %s301
    %p313 = scmp.eq.s32.totalorder %s34, 1
    %p314 = por %p312, %p313
    %p316 = scmp.ne.s32.totalorder %s301, %s315
    %p317 = scmp.eq.s32.totalorder %s34, 0
    %p318 = por %p316, %p317
    %s320 = sadd.s32 %s319, 1
    %p323 = scmp.eq.s32.totalorder %s28, 1
    %p324 = scmp.ne.s32.totalorder %s319, %s321
    %p325 = scmp.eq.s32.totalorder %s28, 0
    %p326 = por %p324, %p325
    %p327 = scmp.ne.s32.totalorder %s319, %s321
    %p328 = scmp.eq.s32.totalorder %s33, 1
    %p329 = por %p327, %p328
    %p330 = scmp.ne.s32.totalorder %s321, %s322
    %p331 = scmp.eq.s32.totalorder %s33, 0
    %p332 = por %p330, %p331
    %p333 = scmp.ne.s32.totalorder %s321, %s322
    %p334 = scmp.eq.s32.totalorder %s34, 1
    %p335 = por %p333, %p334
    %p337 = scmp.ne.s32.totalorder %s322, %s336
    %p338 = scmp.eq.s32.totalorder %s34, 0
    %p339 = por %p337, %p338
    %s341 = sadd.s32 %s340, 1
    %p344 = scmp.eq.s32.totalorder %s28, 1
    %p345 = scmp.ne.s32.totalorder %s340, %s342
    %p346 = scmp.eq.s32.totalorder %s28, 0
    %p347 = por %p345, %p346
    %p348 = scmp.ne.s32.totalorder %s340, %s342
    %p349 = scmp.eq.s32.totalorder %s33, 1
    %p350 = por %p348, %p349
    %p351 = scmp.ne.s32.totalorder %s342, %s343
    %p352 = scmp.eq.s32.totalorder %s33, 0
    %p353 = por %p351, %p352
    %p354 = scmp.ne.s32.totalorder %s342, %s343
    %p355 = scmp.eq.s32.totalorder %s34, 1
    %p356 = por %p354, %p355
    %p358 = scmp.ne.s32.totalorder %s343, %s357
    %p359 = scmp.eq.s32.totalorder %s34, 0
    %p360 = por %p358, %p359
    %s362 = sadd.s32 %s361, 1
    %p365 = scmp.eq.s32.totalorder %s28, 1
    %p366 = scmp.ne.s32.totalorder %s361, %s363
    %p367 = scmp.eq.s32.totalorder %s28, 0
    %p368 = por %p366, %p367
    %p369 = scmp.ne.s32.totalorder %s361, %s363
    %p370 = scmp.eq.s32.totalorder %s33, 1
    %p371 = por %p369, %p370
    %p372 = scmp.ne.s32.totalorder %s363, %s364
    %p373 = scmp.eq.s32.totalorder %s33, 0
    %p374 = por %p372, %p373
    %p375 = scmp.ne.s32.totalorder %s363, %s364
    %p376 = scmp.eq.s32.totalorder %s34, 1
    %p377 = por %p375, %p376
    %p379 = scmp.ne.s32.totalorder %s364, %s378
    %p380 = scmp.eq.s32.totalorder %s34, 0
    %p381 = por %p379, %p380
    %s383 = sadd.s32 %s382, 1
    %p386 = scmp.eq.s32.totalorder %s28, 1
    %p387 = scmp.ne.s32.totalorder %s382, %s384
    %p388 = scmp.eq.s32.totalorder %s28, 0
    %p389 = por %p387, %p388
    %p390 = scmp.ne.s32.totalorder %s382, %s384
    %p391 = scmp.eq.s32.totalorder %s33, 1
    %p392 = por %p390, %p391
    %p393 = scmp.ne.s32.totalorder %s384, %s385
    %p394 = scmp.eq.s32.totalorder %s33, 0
    %p395 = por %p393, %p394
    %p396 = scmp.ne.s32.totalorder %s384, %s385
    %p397 = scmp.eq.s32.totalorder %s34, 1
    %p398 = por %p396, %p397
    %p400 = scmp.ne.s32.totalorder %s385, %s399
    %p401 = scmp.eq.s32.totalorder %s34, 0
    %p402 = por %p400, %p401
    %s404 = sadd.s32 %s403, 1
    %p407 = scmp.eq.s32.totalorder %s28, 1
    %p408 = scmp.ne.s32.totalorder %s403, %s405
    %p409 = scmp.eq.s32.totalorder %s28, 0
    %p410 = por %p408, %p409
    %p411 = scmp.ne.s32.totalorder %s403, %s405
    %p412 = scmp.eq.s32.totalorder %s33, 1
    %p413 = por %p411, %p412
    %p414 = scmp.ne.s32.totalorder %s405, %s406
    %p415 = scmp.eq.s32.totalorder %s33, 0
    %p416 = por %p414, %p415
    %p417 = scmp.ne.s32.totalorder %s405, %s406
    %p418 = scmp.eq.s32.totalorder %s34, 1
    %p419 = por %p417, %p418
    %p421 = scmp.ne.s32.totalorder %s406, %s420
    %p422 = scmp.eq.s32.totalorder %s34, 0
    %p423 = por %p421, %p422
    %s425 = sadd.s32 %s424, 1
    %p428 = scmp.eq.s32.totalorder %s28, 1
    %p429 = scmp.ne.s32.totalorder %s424, %s426
    %p430 = scmp.eq.s32.totalorder %s28, 0
    %p431 = por %p429, %p430
    %p432 = scmp.ne.s32.totalorder %s424, %s426
    %p433 = scmp.eq.s32.totalorder %s33, 1
    %p434 = por %p432, %p433
    %p435 = scmp.ne.s32.totalorder %s426, %s427
    %p436 = scmp.eq.s32.totalorder %s33, 0
    %p437 = por %p435, %p436
    %p438 = scmp.ne.s32.totalorder %s426, %s427
    %p439 = scmp.eq.s32.totalorder %s34, 1
    %p440 = por %p438, %p439
    %p442 = scmp.ne.s32.totalorder %s427, %s441
    %p443 = scmp.eq.s32.totalorder %s34, 0
    %p444 = por %p442, %p443
    %s446 = sadd.s32 %s445, 1
    %p449 = scmp.eq.s32.totalorder %s28, 1
    %p450 = scmp.ne.s32.totalorder %s445, %s447
    %p451 = scmp.eq.s32.totalorder %s28, 0
    %p452 = por %p450, %p451
    %p453 = scmp.ne.s32.totalorder %s445, %s447
    %p454 = scmp.eq.s32.totalorder %s33, 1
    %p455 = por %p453, %p454
    %p456 = scmp.ne.s32.totalorder %s447, %s448
    %p457 = scmp.eq.s32.totalorder %s33, 0
    %p458 = por %p456, %p457
    %p459 = scmp.ne.s32.totalorder %s447, %s448
    %p460 = scmp.eq.s32.totalorder %s34, 1
    %p461 = por %p459, %p460
    %p463 = scmp.ne.s32.totalorder %s448, %s462
    %p464 = scmp.eq.s32.totalorder %s34, 0
    %p465 = por %p463, %p464
    %s466 = ssub.s32 %s28, %s35
    %p467 = scmp.eq.s32.totalorder %s466, 0
    %s469 = sadd.s32 %s468, 1
    %s470 = scalar_select %p467, %s468, %s469
    %p473 = pneg %p467
    %p474 = scmp.eq.s32.totalorder %s28, 1
    %p475 = por %p473, %p474
    %p476 = scmp.ne.s32.totalorder %s468, %s471
    %p477 = scmp.eq.s32.totalorder %s28, 0
    %p478 = por %p476, %p477
    %p479 = scmp.ne.s32.totalorder %s468, %s471
    %p480 = scmp.eq.s32.totalorder %s33, 1
    %p481 = por %p479, %p480
    %p482 = scmp.ne.s32.totalorder %s471, %s472
    %p483 = scmp.eq.s32.totalorder %s33, 0
    %p484 = por %p482, %p483
    %p485 = scmp.ne.s32.totalorder %s471, %s472
    %p486 = scmp.eq.s32.totalorder %s34, 1
    %p487 = por %p485, %p486
    %p489 = scmp.ne.s32.totalorder %s472, %s488
    %p490 = scmp.eq.s32.totalorder %s34, 0
    %p491 = por %p489, %p490
    %p492 = scmp.le.s32.totalorder 1, %s28
    %p493 = scmp.lt.s32.totalorder %s28, 3
    %p494 = pnand %p492, %p493
    %p495 = pneg %p494
    // Predicated region
    $region9: #{name_classifier_forward.1} parent=5 // pred_check
      _
    $region10: #{name_classifier_forward.1} parent=5 // pred_check_branch
      %497 = sbr.rel (%p494) target = $region12
    $region11: #{name_classifier_forward.1} parent=5 // pred_region
      %s498 = ssub.s32 %s28, 1
      // Predicated region
      $region13: #{name_classifier_forward.1} parent=11 // pred_check
        %p499 = pneg %p101
      $region14: #{name_classifier_forward.1} parent=11 // pred_check_branch
        %501 = sbr.rel (%p499) target = $region16
      $region15: #{name_classifier_forward.1} parent=11 // pred_region
        _
      $region16: #{name_classifier_forward.1} parent=11 // pred_fallthru
        _
      // Predicated region
      $region17: #{name_classifier_forward.1} parent=11 // pred_check
        %p502 = pneg %p122
      $region18: #{name_classifier_forward.1} parent=11 // pred_check_branch
        %504 = sbr.rel (%p502) target = $region20
      $region19: #{name_classifier_forward.1} parent=11 // pred_region
        _
      $region20: #{name_classifier_forward.1} parent=11 // pred_fallthru
        _
      // Predicated region
      $region21: #{name_classifier_forward.1} parent=11 // pred_check
        %p505 = pneg %p143
      $region22: #{name_classifier_forward.1} parent=11 // pred_check_branch
        %507 = sbr.rel (%p505) target = $region24
      $region23: #{name_classifier_forward.1} parent=11 // pred_region
        _
      $region24: #{name_classifier_forward.1} parent=11 // pred_fallthru
        _
      // Predicated region
      $region25: #{name_classifier_forward.1} parent=11 // pred_check
        %p508 = pneg %p164
      $region26: #{name_classifier_forward.1} parent=11 // pred_check_branch
        %510 = sbr.rel (%p508) target = $region28
      $region27: #{name_classifier_forward.1} parent=11 // pred_region
        _
      $region28: #{name_classifier_forward.1} parent=11 // pred_fallthru
        _
      // Predicated region
      $region29: #{name_classifier_forward.1} parent=11 // pred_check
        %p511 = pneg %p185
      $region30: #{name_classifier_forward.1} parent=11 // pred_check_branch
        %513 = sbr.rel (%p511) target = $region32
      $region31: #{name_classifier_forward.1} parent=11 // pred_region
        _
      $region32: #{name_classifier_forward.1} parent=11 // pred_fallthru
        _
      // Predicated region
      $region33: #{name_classifier_forward.1} parent=11 // pred_check
        %p514 = pneg %p206
      $region34: #{name_classifier_forward.1} parent=11 // pred_check_branch
        %516 = sbr.rel (%p514) target = $region36
      $region35: #{name_classifier_forward.1} parent=11 // pred_region
        _
      $region36: #{name_classifier_forward.1} parent=11 // pred_fallthru
        _
      // Predicated region
      $region37: #{name_classifier_forward.1} parent=11 // pred_check
        %p517 = pneg %p227
      $region38: #{name_classifier_forward.1} parent=11 // pred_check_branch
        %519 = sbr.rel (%p517) target = $region40
      $region39: #{name_classifier_forward.1} parent=11 // pred_region
        _
      $region40: #{name_classifier_forward.1} parent=11 // pred_fallthru
        _
      // Predicated region
      $region41: #{name_classifier_forward.1} parent=11 // pred_check
        %p520 = pneg %p248
      $region42: #{name_classifier_forward.1} parent=11 // pred_check_branch
        %522 = sbr.rel (%p520) target = $region44
      $region43: #{name_classifier_forward.1} parent=11 // pred_region
        _
      $region44: #{name_classifier_forward.1} parent=11 // pred_fallthru
        _
      // Predicated region
      $region45: #{name_classifier_forward.1} parent=11 // pred_check
        %p523 = pneg %p269
      $region46: #{name_classifier_forward.1} parent=11 // pred_check_branch
        %525 = sbr.rel (%p523) target = $region48
      $region47: #{name_classifier_forward.1} parent=11 // pred_region
        _
      $region48: #{name_classifier_forward.1} parent=11 // pred_fallthru
        _
      // Predicated region
      $region49: #{name_classifier_forward.1} parent=11 // pred_check
        %p526 = pneg %p290
      $region50: #{name_classifier_forward.1} parent=11 // pred_check_branch
        %528 = sbr.rel (%p526) target = $region52
      $region51: #{name_classifier_forward.1} parent=11 // pred_region
        _
      $region52: #{name_classifier_forward.1} parent=11 // pred_fallthru
        _
      // Predicated region
      $region53: #{name_classifier_forward.1} parent=11 // pred_check
        %p529 = pneg %p311
      $region54: #{name_classifier_forward.1} parent=11 // pred_check_branch
        %531 = sbr.rel (%p529) target = $region56
      $region55: #{name_classifier_forward.1} parent=11 // pred_region
        _
      $region56: #{name_classifier_forward.1} parent=11 // pred_fallthru
        _
      // Predicated region
      $region57: #{name_classifier_forward.1} parent=11 // pred_check
        %p532 = pneg %p332
      $region58: #{name_classifier_forward.1} parent=11 // pred_check_branch
        %534 = sbr.rel (%p532) target = $region60
      $region59: #{name_classifier_forward.1} parent=11 // pred_region
        _
      $region60: #{name_classifier_forward.1} parent=11 // pred_fallthru
        _
      // Predicated region
      $region61: #{name_classifier_forward.1} parent=11 // pred_check
        %p535 = pneg %p353
      $region62: #{name_classifier_forward.1} parent=11 // pred_check_branch
        %537 = sbr.rel (%p535) target = $region64
      $region63: #{name_classifier_forward.1} parent=11 // pred_region
        _
      $region64: #{name_classifier_forward.1} parent=11 // pred_fallthru
        _
      // Predicated region
      $region65: #{name_classifier_forward.1} parent=11 // pred_check
        %p538 = pneg %p374
      $region66: #{name_classifier_forward.1} parent=11 // pred_check_branch
        %540 = sbr.rel (%p538) target = $region68
      $region67: #{name_classifier_forward.1} parent=11 // pred_region
        _
      $region68: #{name_classifier_forward.1} parent=11 // pred_fallthru
        _
      // Predicated region
      $region69: #{name_classifier_forward.1} parent=11 // pred_check
        %p541 = pneg %p395
      $region70: #{name_classifier_forward.1} parent=11 // pred_check_branch
        %543 = sbr.rel (%p541) target = $region72
      $region71: #{name_classifier_forward.1} parent=11 // pred_region
        _
      $region72: #{name_classifier_forward.1} parent=11 // pred_fallthru
        _
      // Predicated region
      $region73: #{name_classifier_forward.1} parent=11 // pred_check
        %p544 = pneg %p416
      $region74: #{name_classifier_forward.1} parent=11 // pred_check_branch
        %546 = sbr.rel (%p544) target = $region76
      $region75: #{name_classifier_forward.1} parent=11 // pred_region
        _
      $region76: #{name_classifier_forward.1} parent=11 // pred_fallthru
        _
      // Predicated region
      $region77: #{name_classifier_forward.1} parent=11 // pred_check
        %p547 = pneg %p437
      $region78: #{name_classifier_forward.1} parent=11 // pred_check_branch
        %549 = sbr.rel (%p547) target = $region80
      $region79: #{name_classifier_forward.1} parent=11 // pred_region
        _
      $region80: #{name_classifier_forward.1} parent=11 // pred_fallthru
        _
      // Predicated region
      $region81: #{name_classifier_forward.1} parent=11 // pred_check
        %p550 = pneg %p458
      $region82: #{name_classifier_forward.1} parent=11 // pred_check_branch
        %552 = sbr.rel (%p550) target = $region84
      $region83: #{name_classifier_forward.1} parent=11 // pred_region
        _
      $region84: #{name_classifier_forward.1} parent=11 // pred_fallthru
        _
    $region12: #{name_classifier_forward.1} parent=5 // pred_fallthru
      _
    %p553 = scmp.lt.s32.totalorder %s28, 2
    // Predicated region
    $region85: #{name_classifier_forward.1} parent=5 // pred_check
      %p554 = pneg %p553
    $region86: #{name_classifier_forward.1} parent=5 // pred_check_branch
      %556 = sbr.rel (%p554) target = $region88
    $region87: #{name_classifier_forward.1} parent=5 // pred_region
      // Predicated region
      $region89: #{name_classifier_forward.1} parent=87 // pred_check
        %p557 = pneg %p48
      $region90: #{name_classifier_forward.1} parent=87 // pred_check_branch
        %559 = sbr.rel (%p557) target = $region92
      $region91: #{name_classifier_forward.1} parent=87 // pred_region
        %p560 = scmp.lt.s32.totalorder %s28, 1
        %s561 = scalar_select %p560, %s28, 1
        %s562 = smul.addr %s561, 8
        %s563 = scalar_lea.vmem %s0, %s562
      $region92: #{name_classifier_forward.1} parent=87 // pred_fallthru
        _
      // Predicated region
      $region93: #{name_classifier_forward.1} parent=87 // pred_check
        %p564 = pneg %p74
      $region94: #{name_classifier_forward.1} parent=87 // pred_check_branch
        %566 = sbr.rel (%p564) target = $region96
      $region95: #{name_classifier_forward.1} parent=87 // pred_region
        %p567 = scmp.lt.s32.totalorder %s28, 1
        %s568 = scalar_select %p567, %s28, 1
        %s569 = scalar_lea.vmem %s1, %s568
      $region96: #{name_classifier_forward.1} parent=87 // pred_fallthru
        _
    $region88: #{name_classifier_forward.1} parent=5 // pred_fallthru
      _
    %p570 = scmp.le.s32.totalorder 1, %s28
    %p571 = scmp.lt.s32.totalorder %s28, 3
    %p572 = pnand %p570, %p571
    %p573 = pneg %p572
    // Predicated region
    $region97: #{name_classifier_forward.1} parent=5 // pred_check
      _
    $region98: #{name_classifier_forward.1} parent=5 // pred_check_branch
      %575 = sbr.rel (%p572) target = $region100
    $region99: #{name_classifier_forward.1} parent=5 // pred_region
      %s576 = ssub.s32 %s28, 1
      %p577 = scmp.lt.s32.totalorder %s33, 1
      %s578 = scalar_select %p577, %s33, 1
      %s579 = smul.addr %s578, 8
      %s580 = scalar_lea.vmem %s0, %s579
      %p581 = pneg %p54
      %p582 = pneg %p51
      %p583 = scmp.lt.s32.totalorder %s33, 1
      %s584 = scalar_select %p583, %s33, 1
      %s585 = scalar_lea.vmem %s1, %s584
      %p586 = pneg %p80
      %p587 = pneg %p77
      %p588 = pneg %p101
      %p589 = pneg %p98
      %p590 = pneg %p122
      %p591 = pneg %p119
      %p592 = pneg %p143
      %p593 = pneg %p140
      %p594 = pneg %p164
      %p595 = pneg %p161
      %p596 = pneg %p185
      %p597 = pneg %p182
      %p598 = pneg %p206
      %p599 = pneg %p203
      %p600 = pneg %p227
      %p601 = pneg %p224
      %p602 = pneg %p248
      %p603 = pneg %p245
      %p604 = pneg %p269
      %p605 = pneg %p266
      %p606 = pneg %p290
      %p607 = pneg %p287
      %p608 = pneg %p311
      %p609 = pneg %p308
      %p610 = pneg %p332
      %p611 = pneg %p329
      %p612 = pneg %p353
      %p613 = pneg %p350
      %p614 = pneg %p374
      %p615 = pneg %p371
      %p616 = pneg %p395
      %p617 = pneg %p392
      %p618 = pneg %p416
      %p619 = pneg %p413
      %p620 = pneg %p437
      %p621 = pneg %p434
      %p622 = pneg %p458
      %p623 = pneg %p455
      %p624 = pneg %p484
      %p625 = pneg %p481
      %p626 = scmp.lt.s32.totalorder %s33, 1
      %s627 = scalar_select %p626, %s33, 1
      %s628 = scalar_lea.vmem %s20, %s627
      %p629 = scmp.lt.s32.totalorder %s33, 1
      %s630 = scalar_select %p629, %s33, 1
      %s631 = smul.addr %s630, 8
      %s632 = scalar_lea.vmem %s0, %s631
      %p633 = scmp.lt.s32.totalorder %s33, 1
      %s634 = scalar_select %p633, %s33, 1
      %s635 = scalar_lea.vmem %s1, %s634
      %p636 = scmp.lt.s32.totalorder %s33, 1
      %s637 = scalar_select %p636, %s33, 1
      %s638 = scalar_lea.vmem %s20, %s637
      %v639 = vld [vmem:[%s632] sm:$0xff]
      %v640 = vld [vmem:[%s2] sm:$0x1]
      %v641 = vld [vmem:[%s3] sm:$0x1]
      %vm642 = vcmask 130048
      %v643 = vsel %vm642, %v639, 0.0
      %644 = vadd.xlane.f32.xlu0 %v643
      %v645 = vpop.xlane.xlu0 %644
      %v646 = vrcp.pop 16.0
      %v647 = vmul.f32 %v645, %v646
      %v648 = vsub.f32 %v639, %v647
      %v649 = vmul.f32 %v648, %v648
      %v650 = vsel %vm642, %v649, 0.0
      %651 = vadd.xlane.f32.xlu0 %v650
      %v652 = vpop.xlane.xlu0 %651
      %v653 = vmul.f32 %v652, %v646
      %v654 = vadd.f32 %v653, 1e-12
      %v655 = vrsqrt.pop %v654
      %v656 = vmul.f32 %v648, %v655
      %v658 = vlaneseq
      %v659 = vshrl.u32 %v658, 7
      %v660 = vsub.s32 0, %v659
      %v661 = vrot.slane %v640, %v660
      %v663 = vmul.f32 %v656, %v661
      %v665 = vlaneseq
      %v666 = vshrl.u32 %v665, 7
      %v667 = vsub.s32 0, %v666
      %v668 = vrot.slane %v641, %v667
      %v670 = vadd.f32 %v663, %v668
      %v671 = vld [vmem:[%s4] sm:$0xff]
      %v672 = vld [vmem:[%s4 + $0x8] sm:$0xff]
      %v673 = vld [vmem:[%s5] sm:$0x1]
      %v675 = vlaneseq
      %v676 = vshrl.u32 %v675, 7
      %v677 = vsub.s32 0, %v676
      %v678 = vrot.slane %v673, %v677
      %v681 = vsel %vm642, %v670, 0
      %683 = vmatprep.subr.mxu0 0.0
      %684 = vmatpush1.msra.mxu0 %v671
      %685 = vmatprep.subr.mxu0 0.0
      %686 = vmatpush1.msra.mxu0 %v672
      %687 = vmatprep.subr.mxu0 0.0
      %688 = vmatpush1.msra.mxu0 0.0
      %689 = vmatprep.subr.mxu0 0.0
      %690 = vmatpush1.msra.mxu0 0.0
      %691 = vmatprep.subr.mxu0 0.0
      %692 = vmatpush1.msra.mxu0 0.0
      %693 = vmatprep.subr.mxu0 0.0
      %694 = vmatpush1.msra.mxu0 0.0
      %695 = vmatprep.subr.mxu0 0.0
      %696 = vmatpush1.msra.mxu0 0.0
      %697 = vmatprep.subr.mxu0 0.0
      %698 = vmatpush1.msra.mxu0 0.0
      %699 = vmatprep.subr.mxu0 0.0
      %700 = vmatpush1.msra.mxu0 0.0
      %701 = vmatprep.subr.mxu0 0.0
      %702 = vmatpush1.msra.mxu0 0.0
      %703 = vmatprep.subr.mxu0 0.0
      %704 = vmatpush1.msra.mxu0 0.0
      %705 = vmatprep.subr.mxu0 0.0
      %706 = vmatpush1.msra.mxu0 0.0
      %707 = vmatprep.subr.mxu0 0.0
      %708 = vmatpush1.msra.mxu0 0.0
      %709 = vmatprep.subr.mxu0 0.0
      %710 = vmatpush1.msra.mxu0 0.0
      %711 = vmatprep.subr.mxu0 0.0
      %712 = vmatpush1.msra.mxu0 0.0
      %713 = vmatprep.subr.mxu0 0.0
      %714 = vmatpush1.msra.mxu0 0.0
      %715 = vmatprep.subr.mxu0 0.0
      %716 = vmatpush1.msra.mxu0 0.0
      %717 = vmatprep.subr.mxu0 0.0
      %718 = vmatpush1.msra.mxu0 0.0
      %719 = vmatprep.subr.mxu0 0.0
      %720 = vmatpush1.msra.mxu0 0.0
      %721 = vmatprep.subr.mxu0 0.0
      %722 = vmatpush1.msra.mxu0 0.0
      %723 = vmatprep.subr.mxu0 0.0
      %724 = vmatpush1.msra.mxu0 0.0
      %725 = vmatprep.subr.mxu0 0.0
      %726 = vmatpush1.msra.mxu0 0.0
      %727 = vmatprep.subr.mxu0 0.0
      %728 = vmatpush1.msra.mxu0 0.0
      %729 = vmatprep.subr.mxu0 0.0
      %730 = vmatpush1.msra.mxu0 0.0
      %731 = vmatprep.subr.mxu0 0.0
      %732 = vmatpush1.msra.mxu0 0.0
      %733 = vmatprep.subr.mxu0 0.0
      %734 = vmatpush1.msra.mxu0 0.0
      %735 = vmatprep.subr.mxu0 0.0
      %736 = vmatpush1.msra.mxu0 0.0
      %737 = vmatprep.subr.mxu0 0.0
      %738 = vmatpush1.msra.mxu0 0.0
      %739 = vmatprep.subr.mxu0 0.0
      %740 = vmatpush1.msra.mxu0 0.0
      %741 = vmatprep.subr.mxu0 0.0
      %742 = vmatpush1.msra.mxu0 0.0
      %743 = vmatprep.subr.mxu0 0.0
      %744 = vmatpush1.msra.mxu0 0.0
      %745 = vmatprep.subr.mxu0 0.0
      %746 = vmatpush1.msra.mxu0 0.0
      %747 = vmatprep.mubr.f32.mxu0 0.0
      %748 = vmatmul.mubr.f32.gmra.mrb[0].mxu0 %v681
      %v749 = vpop.f32.mrb[0].mxu0
      %v750 = vadd.f32 %v678, %v749
      %v751 = vpop.f32.mrb[0].mxu0
      %752 = vdwg.mxu0
      %v753 = vld [vmem:[%s635] sm:$0x1]
      %v754 = vsub.f32 1.0, %v753
      %v755 = vmul.f32 %v754, -10000.0
      %v756 = vld [vmem:[%s6] sm:$0xff]
      %v757 = vld [vmem:[%s6 + $0x8] sm:$0xff]
      %v758 = vld [vmem:[%s6 + $0x10] sm:$0xff]
      %v759 = vld [vmem:[%s6 + $0x18] sm:$0xff]
      %v760 = vld [vmem:[%s7] sm:$0x1]
      %v762 = vlaneseq
      %v763 = vshrl.u32 %v762, 7
      %v764 = vsub.s32 0, %v763
      %v765 = vrot.slane %v760, %v764
      %vm767 = vcmask 261120
      %v769 = vsel %vm767, %v750, 0
      %771 = vmatprep.subr.mxu0 0.0
      %772 = vmatpush1.msra.mxu0 %v756
      %773 = vmatprep.subr.mxu0 0.0
      %774 = vmatpush1.msra.mxu0 %v757
      %775 = vmatprep.subr.mxu0 0.0
      %776 = vmatpush1.msra.mxu0 %v758
      %777 = vmatprep.subr.mxu0 0.0
      %778 = vmatpush1.msra.mxu0 %v759
      %779 = vmatprep.subr.mxu0 0.0
      %780 = vmatpush1.msra.mxu0 0.0
      %781 = vmatprep.subr.mxu0 0.0
      %782 = vmatpush1.msra.mxu0 0.0
      %783 = vmatprep.subr.mxu0 0.0
      %784 = vmatpush1.msra.mxu0 0.0
      %785 = vmatprep.subr.mxu0 0.0
      %786 = vmatpush1.msra.mxu0 0.0
      %787 = vmatprep.subr.mxu0 0.0
      %788 = vmatpush1.msra.mxu0 0.0
      %789 = vmatprep.subr.mxu0 0.0
      %790 = vmatpush1.msra.mxu0 0.0
      %791 = vmatprep.subr.mxu0 0.0
      %792 = vmatpush1.msra.mxu0 0.0
      %793 = vmatprep.subr.mxu0 0.0
      %794 = vmatpush1.msra.mxu0 0.0
      %795 = vmatprep.subr.mxu0 0.0
      %796 = vmatpush1.msra.mxu0 0.0
      %797 = vmatprep.subr.mxu0 0.0
      %798 = vmatpush1.msra.mxu0 0.0
      %799 = vmatprep.subr.mxu0 0.0
      %800 = vmatpush1.msra.mxu0 0.0
      %801 = vmatprep.subr.mxu0 0.0
      %802 = vmatpush1.msra.mxu0 0.0
      %803 = vmatprep.subr.mxu0 0.0
      %804 = vmatpush1.msra.mxu0 0.0
      %805 = vmatprep.subr.mxu0 0.0
      %806 = vmatpush1.msra.mxu0 0.0
      %807 = vmatprep.subr.mxu0 0.0
      %808 = vmatpush1.msra.mxu0 0.0
      %809 = vmatprep.subr.mxu0 0.0
      %810 = vmatpush1.msra.mxu0 0.0
      %811 = vmatprep.subr.mxu0 0.0
      %812 = vmatpush1.msra.mxu0 0.0
      %813 = vmatprep.subr.mxu0 0.0
      %814 = vmatpush1.msra.mxu0 0.0
      %815 = vmatprep.subr.mxu0 0.0
      %816 = vmatpush1.msra.mxu0 0.0
      %817 = vmatprep.subr.mxu0 0.0
      %818 = vmatpush1.msra.mxu0 0.0
      %819 = vmatprep.subr.mxu0 0.0
      %820 = vmatpush1.msra.mxu0 0.0
      %821 = vmatprep.subr.mxu0 0.0
      %822 = vmatpush1.msra.mxu0 0.0
      %823 = vmatprep.subr.mxu0 0.0
      %824 = vmatpush1.msra.mxu0 0.0
      %825 = vmatprep.subr.mxu0 0.0
      %826 = vmatpush1.msra.mxu0 0.0
      %827 = vmatprep.subr.mxu0 0.0
      %828 = vmatpush1.msra.mxu0 0.0
      %829 = vmatprep.subr.mxu0 0.0
      %830 = vmatpush1.msra.mxu0 0.0
      %831 = vmatprep.subr.mxu0 0.0
      %832 = vmatpush1.msra.mxu0 0.0
      %833 = vmatprep.subr.mxu0 0.0
      %834 = vmatpush1.msra.mxu0 0.0
      %835 = vmatprep.mubr.f32.mxu0 0.0
      %836 = vmatmul.mubr.f32.gmra.mrb[0].mxu0 %v769
      %v837 = vpop.f32.mrb[0].mxu0
      %v838 = vadd.f32 %v765, %v837
      %v839 = vpop.f32.mrb[0].mxu0
      %840 = vdwg.mxu0
      %842 = vrot.lane.b32.xlu0 %v838, 96
      %v843 = vpop.permute.xlu0 %842
      %v844 = vsel %vm642, %v838, 0
      %v846 = vsel %vm642, %v843, 0
      %848 = vmatprep.subr.mxu0 0.0
      %849 = vmatpush1.xpose.msra.mxu0 %v846
      %850 = vmatprep.subr.mxu0 0.0
      %851 = vmatpush1.xpose.msra.mxu0 0.0
      %852 = vmatprep.subr.mxu0 0.0
      %853 = vmatpush1.xpose.msra.mxu0 0.0
      %854 = vmatprep.subr.mxu0 0.0
      %855 = vmatpush1.xpose.msra.mxu0 0.0
      %856 = vmatprep.subr.mxu0 0.0
      %857 = vmatpush1.xpose.msra.mxu0 0.0
      %858 = vmatprep.subr.mxu0 0.0
      %859 = vmatpush1.xpose.msra.mxu0 0.0
      %860 = vmatprep.subr.mxu0 0.0
      %861 = vmatpush1.xpose.msra.mxu0 0.0
      %862 = vmatprep.subr.mxu0 0.0
      %863 = vmatpush1.xpose.msra.mxu0 0.0
      %864 = vmatprep.subr.mxu0 0.0
      %865 = vmatpush1.xpose.msra.mxu0 0.0
      %866 = vmatprep.subr.mxu0 0.0
      %867 = vmatpush1.xpose.msra.mxu0 0.0
      %868 = vmatprep.subr.mxu0 0.0
      %869 = vmatpush1.xpose.msra.mxu0 0.0
      %870 = vmatprep.subr.mxu0 0.0
      %871 = vmatpush1.xpose.msra.mxu0 0.0
      %872 = vmatprep.subr.mxu0 0.0
      %873 = vmatpush1.xpose.msra.mxu0 0.0
      %874 = vmatprep.subr.mxu0 0.0
      %875 = vmatpush1.xpose.msra.mxu0 0.0
      %876 = vmatprep.subr.mxu0 0.0
      %877 = vmatpush1.xpose.msra.mxu0 0.0
      %878 = vmatprep.subr.mxu0 0.0
      %879 = vmatpush1.xpose.msra.mxu0 0.0
      %880 = vmatprep.subr.mxu0 0.0
      %881 = vmatpush1.xpose.msra.mxu0 0.0
      %882 = vmatprep.subr.mxu0 0.0
      %883 = vmatpush1.xpose.msra.mxu0 0.0
      %884 = vmatprep.subr.mxu0 0.0
      %885 = vmatpush1.xpose.msra.mxu0 0.0
      %886 = vmatprep.subr.mxu0 0.0
      %887 = vmatpush1.xpose.msra.mxu0 0.0
      %888 = vmatprep.subr.mxu0 0.0
      %889 = vmatpush1.xpose.msra.mxu0 0.0
      %890 = vmatprep.subr.mxu0 0.0
      %891 = vmatpush1.xpose.msra.mxu0 0.0
      %892 = vmatprep.subr.mxu0 0.0
      %893 = vmatpush1.xpose.msra.mxu0 0.0
      %894 = vmatprep.subr.mxu0 0.0
      %895 = vmatpush1.xpose.msra.mxu0 0.0
      %896 = vmatprep.subr.mxu0 0.0
      %897 = vmatpush1.xpose.msra.mxu0 0.0
      %898 = vmatprep.subr.mxu0 0.0
      %899 = vmatpush1.xpose.msra.mxu0 0.0
      %900 = vmatprep.subr.mxu0 0.0
      %901 = vmatpush1.xpose.msra.mxu0 0.0
      %902 = vmatprep.subr.mxu0 0.0
      %903 = vmatpush1.xpose.msra.mxu0 0.0
      %904 = vmatprep.subr.mxu0 0.0
      %905 = vmatpush1.xpose.msra.mxu0 0.0
      %906 = vmatprep.subr.mxu0 0.0
      %907 = vmatpush1.xpose.msra.mxu0 0.0
      %908 = vmatprep.subr.mxu0 0.0
      %909 = vmatpush1.xpose.msra.mxu0 0.0
      %910 = vmatprep.subr.mxu0 0.0
      %911 = vmatpush1.xpose.msra.mxu0 0.0
      %912 = vmatprep.mubr.f32.mxu0 0.0
      %913 = vmatmul.mubr.f32.gmra.mrb[0].mxu0 %v844
      %v914 = vpop.f32.mrb[0].mxu0
      %v915 = vadd.f32 0.0, %v914
      %v916 = vpop.f32.mrb[0].mxu0
      %917 = vdwg.mxu0
      %v918 = vmul.f32 %v915, 0.25
      %v920 = vlaneseq
      %v921 = vshrl.u32 %v920, 7
      %v922 = vsub.s32 0, %v921
      %v923 = vrot.slane %v755, %v922
      %v925 = vadd.f32 %v918, %v923
      %vm926 = vcmask 64512
      %v927 = vsel %vm926, %v925, -inf
      %928 = vmax.xlane.f32.xlu0 %v927
      %v929 = vpop.xlane.xlu0 %928
      %v930 = vsub.f32 %v925, %v929
      %v931 = vmul.f32 %v930, 1.442695
      %v932 = vpow.pop %v931
      %v933 = vsel %vm926, %v932, 0.0
      %934 = vadd.xlane.f32.xlu0 %v933
      %v935 = vpop.xlane.xlu0 %934
      %v936 = vrcp.pop %v935
      %v937 = vmul.f32 %v932, %v936
      %938 = vrot.lane.b32.xlu0 %v838, 64
      %v939 = vpop.permute.xlu0 %938
      %v942 = vsel %vm926, %v937, 0
      %944 = vmatprep.subr.mxu0 0.0
      %945 = vmatpush1.msra.mxu0 %v939
      %946 = vmatprep.subr.mxu0 0.0
      %947 = vmatpush1.msra.mxu0 0.0
      %948 = vmatprep.subr.mxu0 0.0
      %949 = vmatpush1.msra.mxu0 0.0
      %950 = vmatprep.subr.mxu0 0.0
      %951 = vmatpush1.msra.mxu0 0.0
      %952 = vmatprep.subr.mxu0 0.0
      %953 = vmatpush1.msra.mxu0 0.0
      %954 = vmatprep.subr.mxu0 0.0
      %955 = vmatpush1.msra.mxu0 0.0
      %956 = vmatprep.subr.mxu0 0.0
      %957 = vmatpush1.msra.mxu0 0.0
      %958 = vmatprep.subr.mxu0 0.0
      %959 = vmatpush1.msra.mxu0 0.0
      %960 = vmatprep.subr.mxu0 0.0
      %961 = vmatpush1.msra.mxu0 0.0
      %962 = vmatprep.subr.mxu0 0.0
      %963 = vmatpush1.msra.mxu0 0.0
      %964 = vmatprep.subr.mxu0 0.0
      %965 = vmatpush1.msra.mxu0 0.0
      %966 = vmatprep.subr.mxu0 0.0
      %967 = vmatpush1.msra.mxu0 0.0
      %968 = vmatprep.subr.mxu0 0.0
      %969 = vmatpush1.msra.mxu0 0.0
      %970 = vmatprep.subr.mxu0 0.0
      %971 = vmatpush1.msra.mxu0 0.0
      %972 = vmatprep.subr.mxu0 0.0
      %973 = vmatpush1.msra.mxu0 0.0
      %974 = vmatprep.subr.mxu0 0.0
      %975 = vmatpush1.msra.mxu0 0.0
      %976 = vmatprep.subr.mxu0 0.0
      %977 = vmatpush1.msra.mxu0 0.0
      %978 = vmatprep.subr.mxu0 0.0
      %979 = vmatpush1.msra.mxu0 0.0
      %980 = vmatprep.subr.mxu0 0.0
      %981 = vmatpush1.msra.mxu0 0.0
      %982 = vmatprep.subr.mxu0 0.0
      %983 = vmatpush1.msra.mxu0 0.0
      %984 = vmatprep.subr.mxu0 0.0
      %985 = vmatpush1.msra.mxu0 0.0
      %986 = vmatprep.subr.mxu0 0.0
      %987 = vmatpush1.msra.mxu0 0.0
      %988 = vmatprep.subr.mxu0 0.0
      %989 = vmatpush1.msra.mxu0 0.0
      %990 = vmatprep.subr.mxu0 0.0
      %991 = vmatpush1.msra.mxu0 0.0
      %992 = vmatprep.subr.mxu0 0.0
      %993 = vmatpush1.msra.mxu0 0.0
      %994 = vmatprep.subr.mxu0 0.0
      %995 = vmatpush1.msra.mxu0 0.0
      %996 = vmatprep.subr.mxu0 0.0
      %997 = vmatpush1.msra.mxu0 0.0
      %998 = vmatprep.subr.mxu0 0.0
      %999 = vmatpush1.msra.mxu0 0.0
      %1000 = vmatprep.subr.mxu0 0.0
      %1001 = vmatpush1.msra.mxu0 0.0
      %1002 = vmatprep.subr.mxu0 0.0
      %1003 = vmatpush1.msra.mxu0 0.0
      %1004 = vmatprep.subr.mxu0 0.0
      %1005 = vmatpush1.msra.mxu0 0.0
      %1006 = vmatprep.subr.mxu0 0.0
      %1007 = vmatpush1.msra.mxu0 0.0
      %1008 = vmatprep.mubr.f32.mxu0 0.0
      %1009 = vmatmul.mubr.f32.gmra.mrb[0].mxu0 %v942
      %v1010 = vpop.f32.mrb[0].mxu0
      %v1011 = vadd.f32 0.0, %v1010
      %v1012 = vpop.f32.mrb[0].mxu0
      %1013 = vdwg.mxu0
      %1014 = vst.msk [vmem:[#allocation2] sm:$0xff] %vm642, %v1011
      %1015 = vrot.lane.b32.xlu0 %v838, 112
      %v1016 = vpop.permute.xlu0 %1015
      %1017 = vrot.lane.b32.xlu0 %v838, 80
      %v1018 = vpop.permute.xlu0 %1017
      %v1019 = vsel %vm642, %v1016, 0
      %v1021 = vsel %vm642, %v1018, 0
      %1023 = vmatprep.subr.mxu0 0.0
      %1024 = vmatpush1.xpose.msra.mxu0 %v1021
      %1025 = vmatprep.subr.mxu0 0.0
      %1026 = vmatpush1.xpose.msra.mxu0 0.0
      %1027 = vmatprep.subr.mxu0 0.0
      %1028 = vmatpush1.xpose.msra.mxu0 0.0
      %1029 = vmatprep.subr.mxu0 0.0
      %1030 = vmatpush1.xpose.msra.mxu0 0.0
      %1031 = vmatprep.subr.mxu0 0.0
      %1032 = vmatpush1.xpose.msra.mxu0 0.0
      %1033 = vmatprep.subr.mxu0 0.0
      %1034 = vmatpush1.xpose.msra.mxu0 0.0
      %1035 = vmatprep.subr.mxu0 0.0
      %1036 = vmatpush1.xpose.msra.mxu0 0.0
      %1037 = vmatprep.subr.mxu0 0.0
      %1038 = vmatpush1.xpose.msra.mxu0 0.0
      %1039 = vmatprep.subr.mxu0 0.0
      %1040 = vmatpush1.xpose.msra.mxu0 0.0
      %1041 = vmatprep.subr.mxu0 0.0
      %1042 = vmatpush1.xpose.msra.mxu0 0.0
      %1043 = vmatprep.subr.mxu0 0.0
      %1044 = vmatpush1.xpose.msra.mxu0 0.0
      %1045 = vmatprep.subr.mxu0 0.0
      %1046 = vmatpush1.xpose.msra.mxu0 0.0
      %1047 = vmatprep.subr.mxu0 0.0
      %1048 = vmatpush1.xpose.msra.mxu0 0.0
      %1049 = vmatprep.subr.mxu0 0.0
      %1050 = vmatpush1.xpose.msra.mxu0 0.0
      %1051 = vmatprep.subr.mxu0 0.0
      %1052 = vmatpush1.xpose.msra.mxu0 0.0
      %1053 = vmatprep.subr.mxu0 0.0
      %1054 = vmatpush1.xpose.msra.mxu0 0.0
      %1055 = vmatprep.subr.mxu0 0.0
      %1056 = vmatpush1.xpose.msra.mxu0 0.0
      %1057 = vmatprep.subr.mxu0 0.0
      %1058 = vmatpush1.xpose.msra.mxu0 0.0
      %1059 = vmatprep.subr.mxu0 0.0
      %1060 = vmatpush1.xpose.msra.mxu0 0.0
      %1061 = vmatprep.subr.mxu0 0.0
      %1062 = vmatpush1.xpose.msra.mxu0 0.0
      %1063 = vmatprep.subr.mxu0 0.0
      %1064 = vmatpush1.xpose.msra.mxu0 0.0
      %1065 = vmatprep.subr.mxu0 0.0
      %1066 = vmatpush1.xpose.msra.mxu0 0.0
      %1067 = vmatprep.subr.mxu0 0.0
      %1068 = vmatpush1.xpose.msra.mxu0 0.0
      %1069 = vmatprep.subr.mxu0 0.0
      %1070 = vmatpush1.xpose.msra.mxu0 0.0
      %1071 = vmatprep.subr.mxu0 0.0
      %1072 = vmatpush1.xpose.msra.mxu0 0.0
      %1073 = vmatprep.subr.mxu0 0.0
      %1074 = vmatpush1.xpose.msra.mxu0 0.0
      %1075 = vmatprep.subr.mxu0 0.0
      %1076 = vmatpush1.xpose.msra.mxu0 0.0
      %1077 = vmatprep.subr.mxu0 0.0
      %1078 = vmatpush1.xpose.msra.mxu0 0.0
      %1079 = vmatprep.subr.mxu0 0.0
      %1080 = vmatpush1.xpose.msra.mxu0 0.0
      %1081 = vmatprep.subr.mxu0 0.0
      %1082 = vmatpush1.xpose.msra.mxu0 0.0
      %1083 = vmatprep.subr.mxu0 0.0
      %1084 = vmatpush1.xpose.msra.mxu0 0.0
      %1085 = vmatprep.subr.mxu0 0.0
      %1086 = vmatpush1.xpose.msra.mxu0 0.0
      %1087 = vmatprep.mubr.f32.mxu0 0.0
      %1088 = vmatmul.mubr.f32.gmra.mrb[0].mxu0 %v1019
      %v1089 = vpop.f32.mrb[0].mxu0
      %v1090 = vadd.f32 0.0, %v1089
      %v1091 = vpop.f32.mrb[0].mxu0
      %1092 = vdwg.mxu0
      %v1093 = vmul.f32 %v1090, 0.25
      %v1094 = vadd.f32 %v1093, %v923
      %v1095 = vsel %vm926, %v1094, -inf
      %1096 = vmax.xlane.f32.xlu0 %v1095
      %v1097 = vpop.xlane.xlu0 %1096
      %v1098 = vsub.f32 %v1094, %v1097
      %v1099 = vmul.f32 %v1098, 1.442695
      %v1100 = vpow.pop %v1099
      %v1101 = vsel %vm926, %v1100, 0.0
      %1102 = vadd.xlane.f32.xlu0 %v1101
      %v1103 = vpop.xlane.xlu0 %1102
      %v1104 = vrcp.pop %v1103
      %v1105 = vmul.f32 %v1100, %v1104
      %1106 = vrot.lane.b32.xlu0 %v838, 48
      %v1107 = vpop.permute.xlu0 %1106
      %v1110 = vsel %vm926, %v1105, 0
      %1112 = vmatprep.subr.mxu0 0.0
      %1113 = vmatpush1.msra.mxu0 %v1107
      %1114 = vmatprep.subr.mxu0 0.0
      %1115 = vmatpush1.msra.mxu0 0.0
      %1116 = vmatprep.subr.mxu0 0.0
      %1117 = vmatpush1.msra.mxu0 0.0
      %1118 = vmatprep.subr.mxu0 0.0
      %1119 = vmatpush1.msra.mxu0 0.0
      %1120 = vmatprep.subr.mxu0 0.0
      %1121 = vmatpush1.msra.mxu0 0.0
      %1122 = vmatprep.subr.mxu0 0.0
      %1123 = vmatpush1.msra.mxu0 0.0
      %1124 = vmatprep.subr.mxu0 0.0
      %1125 = vmatpush1.msra.mxu0 0.0
      %1126 = vmatprep.subr.mxu0 0.0
      %1127 = vmatpush1.msra.mxu0 0.0
      %1128 = vmatprep.subr.mxu0 0.0
      %1129 = vmatpush1.msra.mxu0 0.0
      %1130 = vmatprep.subr.mxu0 0.0
      %1131 = vmatpush1.msra.mxu0 0.0
      %1132 = vmatprep.subr.mxu0 0.0
      %1133 = vmatpush1.msra.mxu0 0.0
      %1134 = vmatprep.subr.mxu0 0.0
      %1135 = vmatpush1.msra.mxu0 0.0
      %1136 = vmatprep.subr.mxu0 0.0
      %1137 = vmatpush1.msra.mxu0 0.0
      %1138 = vmatprep.subr.mxu0 0.0
      %1139 = vmatpush1.msra.mxu0 0.0
      %1140 = vmatprep.subr.mxu0 0.0
      %1141 = vmatpush1.msra.mxu0 0.0
      %1142 = vmatprep.subr.mxu0 0.0
      %1143 = vmatpush1.msra.mxu0 0.0
      %1144 = vmatprep.subr.mxu0 0.0
      %1145 = vmatpush1.msra.mxu0 0.0
      %1146 = vmatprep.subr.mxu0 0.0
      %1147 = vmatpush1.msra.mxu0 0.0
      %1148 = vmatprep.subr.mxu0 0.0
      %1149 = vmatpush1.msra.mxu0 0.0
      %1150 = vmatprep.subr.mxu0 0.0
      %1151 = vmatpush1.msra.mxu0 0.0
      %1152 = vmatprep.subr.mxu0 0.0
      %1153 = vmatpush1.msra.mxu0 0.0
      %1154 = vmatprep.subr.mxu0 0.0
      %1155 = vmatpush1.msra.mxu0 0.0
      %1156 = vmatprep.subr.mxu0 0.0
      %1157 = vmatpush1.msra.mxu0 0.0
      %1158 = vmatprep.subr.mxu0 0.0
      %1159 = vmatpush1.msra.mxu0 0.0
      %1160 = vmatprep.subr.mxu0 0.0
      %1161 = vmatpush1.msra.mxu0 0.0
      %1162 = vmatprep.subr.mxu0 0.0
      %1163 = vmatpush1.msra.mxu0 0.0
      %1164 = vmatprep.subr.mxu0 0.0
      %1165 = vmatpush1.msra.mxu0 0.0
      %1166 = vmatprep.subr.mxu0 0.0
      %1167 = vmatpush1.msra.mxu0 0.0
      %1168 = vmatprep.subr.mxu0 0.0
      %1169 = vmatpush1.msra.mxu0 0.0
      %1170 = vmatprep.subr.mxu0 0.0
      %1171 = vmatpush1.msra.mxu0 0.0
      %1172 = vmatprep.subr.mxu0 0.0
      %1173 = vmatpush1.msra.mxu0 0.0
      %1174 = vmatprep.subr.mxu0 0.0
      %1175 = vmatpush1.msra.mxu0 0.0
      %1176 = vmatprep.mubr.f32.mxu0 0.0
      %1177 = vmatmul.mubr.f32.gmra.mrb[0].mxu0 %v1110
      %v1178 = vpop.f32.mrb[0].mxu0
      %v1179 = vadd.f32 0.0, %v1178
      %v1180 = vpop.f32.mrb[0].mxu0
      %1181 = vdwg.mxu0
      %1183 = vrot.lane.b32.xlu0 %v1179, 16
      %v1184 = vpop.permute.xlu0 %1183
      %vm1186 = vcmask 261248
      %1187 = vst.msk [vmem:[#allocation2] sm:$0xff] %vm1186, %v1184
      %v1188 = vld [vmem:[#allocation2] sm:$0xff]
      %v1189 = vld [vmem:[%s8] sm:$0xff]
      %v1190 = vld [vmem:[%s8 + $0x8] sm:$0xff]
      %v1191 = vld [vmem:[%s8 + $0x10] sm:$0xff]
      %v1192 = vld [vmem:[%s8 + $0x18] sm:$0xff]
      %v1193 = vld [vmem:[%s9] sm:$0x1]
      %v1195 = vlaneseq
      %v1196 = vshrl.u32 %v1195, 7
      %v1197 = vsub.s32 0, %v1196
      %v1198 = vrot.slane %v1193, %v1197
      %v1201 = vsel %vm767, %v1188, 0
      %1203 = vmatprep.subr.mxu0 0.0
      %1204 = vmatpush1.msra.mxu0 %v1189
      %1205 = vmatprep.subr.mxu0 0.0
      %1206 = vmatpush1.msra.mxu0 %v1190
      %1207 = vmatprep.subr.mxu0 0.0
      %1208 = vmatpush1.msra.mxu0 %v1191
      %1209 = vmatprep.subr.mxu0 0.0
      %1210 = vmatpush1.msra.mxu0 %v1192
      %1211 = vmatprep.subr.mxu0 0.0
      %1212 = vmatpush1.msra.mxu0 0.0
      %1213 = vmatprep.subr.mxu0 0.0
      %1214 = vmatpush1.msra.mxu0 0.0
      %1215 = vmatprep.subr.mxu0 0.0
      %1216 = vmatpush1.msra.mxu0 0.0
      %1217 = vmatprep.subr.mxu0 0.0
      %1218 = vmatpush1.msra.mxu0 0.0
      %1219 = vmatprep.subr.mxu0 0.0
      %1220 = vmatpush1.msra.mxu0 0.0
      %1221 = vmatprep.subr.mxu0 0.0
      %1222 = vmatpush1.msra.mxu0 0.0
      %1223 = vmatprep.subr.mxu0 0.0
      %1224 = vmatpush1.msra.mxu0 0.0
      %1225 = vmatprep.subr.mxu0 0.0
      %1226 = vmatpush1.msra.mxu0 0.0
      %1227 = vmatprep.subr.mxu0 0.0
      %1228 = vmatpush1.msra.mxu0 0.0
      %1229 = vmatprep.subr.mxu0 0.0
      %1230 = vmatpush1.msra.mxu0 0.0
      %1231 = vmatprep.subr.mxu0 0.0
      %1232 = vmatpush1.msra.mxu0 0.0
      %1233 = vmatprep.subr.mxu0 0.0
      %1234 = vmatpush1.msra.mxu0 0.0
      %1235 = vmatprep.subr.mxu0 0.0
      %1236 = vmatpush1.msra.mxu0 0.0
      %1237 = vmatprep.subr.mxu0 0.0
      %1238 = vmatpush1.msra.mxu0 0.0
      %1239 = vmatprep.subr.mxu0 0.0
      %1240 = vmatpush1.msra.mxu0 0.0
      %1241 = vmatprep.subr.mxu0 0.0
      %1242 = vmatpush1.msra.mxu0 0.0
      %1243 = vmatprep.subr.mxu0 0.0
      %1244 = vmatpush1.msra.mxu0 0.0
      %1245 = vmatprep.subr.mxu0 0.0
      %1246 = vmatpush1.msra.mxu0 0.0
      %1247 = vmatprep.subr.mxu0 0.0
      %1248 = vmatpush1.msra.mxu0 0.0
      %1249 = vmatprep.subr.mxu0 0.0
      %1250 = vmatpush1.msra.mxu0 0.0
      %1251 = vmatprep.subr.mxu0 0.0
      %1252 = vmatpush1.msra.mxu0 0.0
      %1253 = vmatprep.subr.mxu0 0.0
      %1254 = vmatpush1.msra.mxu0 0.0
      %1255 = vmatprep.subr.mxu0 0.0
      %1256 = vmatpush1.msra.mxu0 0.0
      %1257 = vmatprep.subr.mxu0 0.0
      %1258 = vmatpush1.msra.mxu0 0.0
      %1259 = vmatprep.subr.mxu0 0.0
      %1260 = vmatpush1.msra.mxu0 0.0
      %1261 = vmatprep.subr.mxu0 0.0
      %1262 = vmatpush1.msra.mxu0 0.0
      %1263 = vmatprep.subr.mxu0 0.0
      %1264 = vmatpush1.msra.mxu0 0.0
      %1265 = vmatprep.subr.mxu0 0.0
      %1266 = vmatpush1.msra.mxu0 0.0
      %1267 = vmatprep.mubr.f32.mxu0 0.0
      %1268 = vmatmul.mubr.f32.gmra.mrb[0].mxu0 %v1201
      %v1269 = vpop.f32.mrb[0].mxu0
      %v1270 = vadd.f32 %v1198, %v1269
      %v1271 = vpop.f32.mrb[0].mxu0
      %1272 = vdwg.mxu0
      %v1273 = vadd.f32 %v1270, %v750
      %v1274 = vld [vmem:[%s10] sm:$0x1]
      %v1275 = vld [vmem:[%s11] sm:$0x1]
      %v1276 = vsel %vm767, %v1273, 0.0
      %1277 = vadd.xlane.f32.xlu0 %v1276
      %v1278 = vpop.xlane.xlu0 %1277
      %v1279 = vrcp.pop 32.0
      %v1280 = vmul.f32 %v1278, %v1279
      %v1281 = vsub.f32 %v1273, %v1280
      %v1282 = vmul.f32 %v1281, %v1281
      %v1283 = vsel %vm767, %v1282, 0.0
      %1284 = vadd.xlane.f32.xlu0 %v1283
      %v1285 = vpop.xlane.xlu0 %1284
      %v1286 = vmul.f32 %v1285, %v1279
      %v1287 = vadd.f32 %v1286, 1e-12
      %v1288 = vrsqrt.pop %v1287
      %v1289 = vmul.f32 %v1281, %v1288
      %v1291 = vlaneseq
      %v1292 = vshrl.u32 %v1291, 7
      %v1293 = vsub.s32 0, %v1292
      %v1294 = vrot.slane %v1274, %v1293
      %v1296 = vmul.f32 %v1289, %v1294
      %v1298 = vlaneseq
      %v1299 = vshrl.u32 %v1298, 7
      %v1300 = vsub.s32 0, %v1299
      %v1301 = vrot.slane %v1275, %v1300
      %v1303 = vadd.f32 %v1296, %v1301
      %v1304 = vld [vmem:[%s12] sm:$0xff]
      %v1305 = vld [vmem:[%s12 + $0x8] sm:$0xff]
      %v1306 = vld [vmem:[%s12 + $0x10] sm:$0xff]
      %v1307 = vld [vmem:[%s12 + $0x18] sm:$0xff]
      %v1308 = vld [vmem:[%s13] sm:$0x1]
      %v1310 = vlaneseq
      %v1311 = vshrl.u32 %v1310, 7
      %v1312 = vsub.s32 0, %v1311
      %v1313 = vrot.slane %v1308, %v1312
      %v1316 = vsel %vm767, %v1303, 0
      %1318 = vmatprep.subr.mxu0 0.0
      %1319 = vmatpush1.msra.mxu0 %v1304
      %1320 = vmatprep.subr.mxu0 0.0
      %1321 = vmatpush1.msra.mxu0 %v1305
      %1322 = vmatprep.subr.mxu0 0.0
      %1323 = vmatpush1.msra.mxu0 %v1306
      %1324 = vmatprep.subr.mxu0 0.0
      %1325 = vmatpush1.msra.mxu0 %v1307
      %1326 = vmatprep.subr.mxu0 0.0
      %1327 = vmatpush1.msra.mxu0 0.0
      %1328 = vmatprep.subr.mxu0 0.0
      %1329 = vmatpush1.msra.mxu0 0.0
      %1330 = vmatprep.subr.mxu0 0.0
      %1331 = vmatpush1.msra.mxu0 0.0
      %1332 = vmatprep.subr.mxu0 0.0
      %1333 = vmatpush1.msra.mxu0 0.0
      %1334 = vmatprep.subr.mxu0 0.0
      %1335 = vmatpush1.msra.mxu0 0.0
      %1336 = vmatprep.subr.mxu0 0.0
      %1337 = vmatpush1.msra.mxu0 0.0
      %1338 = vmatprep.subr.mxu0 0.0
      %1339 = vmatpush1.msra.mxu0 0.0
      %1340 = vmatprep.subr.mxu0 0.0
      %1341 = vmatpush1.msra.mxu0 0.0
      %1342 = vmatprep.subr.mxu0 0.0
      %1343 = vmatpush1.msra.mxu0 0.0
      %1344 = vmatprep.subr.mxu0 0.0
      %1345 = vmatpush1.msra.mxu0 0.0
      %1346 = vmatprep.subr.mxu0 0.0
      %1347 = vmatpush1.msra.mxu0 0.0
      %1348 = vmatprep.subr.mxu0 0.0
      %1349 = vmatpush1.msra.mxu0 0.0
      %1350 = vmatprep.subr.mxu0 0.0
      %1351 = vmatpush1.msra.mxu0 0.0
      %1352 = vmatprep.subr.mxu0 0.0
      %1353 = vmatpush1.msra.mxu0 0.0
      %1354 = vmatprep.subr.mxu0 0.0
      %1355 = vmatpush1.msra.mxu0 0.0
      %1356 = vmatprep.subr.mxu0 0.0
      %1357 = vmatpush1.msra.mxu0 0.0
      %1358 = vmatprep.subr.mxu0 0.0
      %1359 = vmatpush1.msra.mxu0 0.0
      %1360 = vmatprep.subr.mxu0 0.0
      %1361 = vmatpush1.msra.mxu0 0.0
      %1362 = vmatprep.subr.mxu0 0.0
      %1363 = vmatpush1.msra.mxu0 0.0
      %1364 = vmatprep.subr.mxu0 0.0
      %1365 = vmatpush1.msra.mxu0 0.0
      %1366 = vmatprep.subr.mxu0 0.0
      %1367 = vmatpush1.msra.mxu0 0.0
      %1368 = vmatprep.subr.mxu0 0.0
      %1369 = vmatpush1.msra.mxu0 0.0
      %1370 = vmatprep.subr.mxu0 0.0
      %1371 = vmatpush1.msra.mxu0 0.0
      %1372 = vmatprep.subr.mxu0 0.0
      %1373 = vmatpush1.msra.mxu0 0.0
      %1374 = vmatprep.subr.mxu0 0.0
      %1375 = vmatpush1.msra.mxu0 0.0
      %1376 = vmatprep.subr.mxu0 0.0
      %1377 = vmatpush1.msra.mxu0 0.0
      %1378 = vmatprep.subr.mxu0 0.0
      %1379 = vmatpush1.msra.mxu0 0.0
      %1380 = vmatprep.subr.mxu0 0.0
      %1381 = vmatpush1.msra.mxu0 0.0
      %1382 = vmatprep.mubr.f32.mxu0 0.0
      %1383 = vmatmul.mubr.f32.gmra.mrb[0].mxu0 %v1316
      %v1384 = vpop.f32.mrb[0].mxu0
      %v1385 = vadd.f32 %v1313, %v1384
      %v1386 = vpop.f32.mrb[0].mxu0
      %1387 = vdwg.mxu0
      %v1388 = vmul.f32 %v1385, %v1385
      %v1389 = vmul.f32 %v1385, %v1388
      %v1390 = vmul.f32 %v1389, 0.044715
      %v1391 = vadd.f32 %v1385, %v1390
      %v1392 = vmul.f32 %v1391, 0.7978846
      %v1393 = vtanh.pop %v1392
      %v1394 = vadd.f32 %v1393, 1.0
      %v1395 = vmul.f32 %v1394, 0.5
      %v1396 = vmul.f32 %v1385, %v1395
      %v1397 = vld [vmem:[%s14] sm:$0xff]
      %v1398 = vld [vmem:[%s14 + $0x8] sm:$0xff]
      %v1399 = vld [vmem:[%s14 + $0x10] sm:$0xff]
      %v1400 = vld [vmem:[%s14 + $0x18] sm:$0xff]
      %v1401 = vld [vmem:[%s14 + $0x20] sm:$0xff]
      %v1402 = vld [vmem:[%s14 + $0x28] sm:$0xff]
      %v1403 = vld [vmem:[%s14 + $0x30] sm:$0xff]
      %v1404 = vld [vmem:[%s14 + $0x38] sm:$0xff]
      %v1405 = vld [vmem:[%s15] sm:$0x1]
      %v1407 = vlaneseq
      %v1408 = vshrl.u32 %v1407, 7
      %v1409 = vsub.s32 0, %v1408
      %v1410 = vrot.slane %v1405, %v1409
      %vm1412 = vcmask 523264
      %v1414 = vsel %vm1412, %v1396, 0
      %1416 = vmatprep.subr.mxu0 0.0
      %1417 = vmatpush1.msra.mxu0 %v1397
      %1418 = vmatprep.subr.mxu0 0.0
      %1419 = vmatpush1.msra.mxu0 %v1398
      %1420 = vmatprep.subr.mxu0 0.0
      %1421 = vmatpush1.msra.mxu0 %v1399
      %1422 = vmatprep.subr.mxu0 0.0
      %1423 = vmatpush1.msra.mxu0 %v1400
      %1424 = vmatprep.subr.mxu0 0.0
      %1425 = vmatpush1.msra.mxu0 %v1401
      %1426 = vmatprep.subr.mxu0 0.0
      %1427 = vmatpush1.msra.mxu0 %v1402
      %1428 = vmatprep.subr.mxu0 0.0
      %1429 = vmatpush1.msra.mxu0 %v1403
      %1430 = vmatprep.subr.mxu0 0.0
      %1431 = vmatpush1.msra.mxu0 %v1404
      %1432 = vmatprep.subr.mxu0 0.0
      %1433 = vmatpush1.msra.mxu0 0.0
      %1434 = vmatprep.subr.mxu0 0.0
      %1435 = vmatpush1.msra.mxu0 0.0
      %1436 = vmatprep.subr.mxu0 0.0
      %1437 = vmatpush1.msra.mxu0 0.0
      %1438 = vmatprep.subr.mxu0 0.0
      %1439 = vmatpush1.msra.mxu0 0.0
      %1440 = vmatprep.subr.mxu0 0.0
      %1441 = vmatpush1.msra.mxu0 0.0
      %1442 = vmatprep.subr.mxu0 0.0
      %1443 = vmatpush1.msra.mxu0 0.0
      %1444 = vmatprep.subr.mxu0 0.0
      %1445 = vmatpush1.msra.mxu0 0.0
      %1446 = vmatprep.subr.mxu0 0.0
      %1447 = vmatpush1.msra.mxu0 0.0
      %1448 = vmatprep.subr.mxu0 0.0
      %1449 = vmatpush1.msra.mxu0 0.0
      %1450 = vmatprep.subr.mxu0 0.0
      %1451 = vmatpush1.msra.mxu0 0.0
      %1452 = vmatprep.subr.mxu0 0.0
      %1453 = vmatpush1.msra.mxu0 0.0
      %1454 = vmatprep.subr.mxu0 0.0
      %1455 = vmatpush1.msra.mxu0 0.0
      %1456 = vmatprep.subr.mxu0 0.0
      %1457 = vmatpush1.msra.mxu0 0.0
      %1458 = vmatprep.subr.mxu0 0.0
      %1459 = vmatpush1.msra.mxu0 0.0
      %1460 = vmatprep.subr.mxu0 0.0
      %1461 = vmatpush1.msra.mxu0 0.0
      %1462 = vmatprep.subr.mxu0 0.0
      %1463 = vmatpush1.msra.mxu0 0.0
      %1464 = vmatprep.subr.mxu0 0.0
      %1465 = vmatpush1.msra.mxu0 0.0
      %1466 = vmatprep.subr.mxu0 0.0
      %1467 = vmatpush1.msra.mxu0 0.0
      %1468 = vmatprep.subr.mxu0 0.0
      %1469 = vmatpush1.msra.mxu0 0.0
      %1470 = vmatprep.subr.mxu0 0.0
      %1471 = vmatpush1.msra.mxu0 0.0
      %1472 = vmatprep.subr.mxu0 0.0
      %1473 = vmatpush1.msra.mxu0 0.0
      %1474 = vmatprep.subr.mxu0 0.0
      %1475 = vmatpush1.msra.mxu0 0.0
      %1476 = vmatprep.subr.mxu0 0.0
      %1477 = vmatpush1.msra.mxu0 0.0
      %1478 = vmatprep.subr.mxu0 0.0
      %1479 = vmatpush1.msra.mxu0 0.0
      %1480 = vmatprep.mubr.f32.mxu0 0.0
      %1481 = vmatmul.mubr.f32.gmra.mrb[0].mxu0 %v1414
      %v1482 = vpop.f32.mrb[0].mxu0
      %v1483 = vadd.f32 %v1410, %v1482
      %v1484 = vpop.f32.mrb[0].mxu0
      %1485 = vdwg.mxu0
      %v1486 = vadd.f32 %v1483, %v1303
      %v1487 = vld [vmem:[%s16] sm:$0x1]
      %v1488 = vld [vmem:[%s17] sm:$0x1]
      %v1489 = vsel %vm767, %v1486, 0.0
      %1490 = vadd.xlane.f32.xlu0 %v1489
      %v1491 = vpop.xlane.xlu0 %1490
      %v1492 = vmul.f32 %v1491, %v1279
      %v1493 = vsub.f32 %v1486, %v1492
      %v1494 = vmul.f32 %v1493, %v1493
      %v1495 = vsel %vm767, %v1494, 0.0
      %1496 = vadd.xlane.f32.xlu0 %v1495
      %v1497 = vpop.xlane.xlu0 %1496
      %v1498 = vmul.f32 %v1497, %v1279
      %v1499 = vadd.f32 %v1498, 1e-12
      %v1500 = vrsqrt.pop %v1499
      %v1501 = vmul.f32 %v1493, %v1500
      %v1503 = vlaneseq
      %v1504 = vshrl.u32 %v1503, 7
      %v1505 = vsub.s32 0, %v1504
      %v1506 = vrot.slane %v1487, %v1505
      %v1508 = vmul.f32 %v1501, %v1506
      %v1510 = vlaneseq
      %v1511 = vshrl.u32 %v1510, 7
      %v1512 = vsub.s32 0, %v1511
      %v1513 = vrot.slane %v1488, %v1512
      %v1515 = vadd.f32 %v1508, %v1513
      %v1516 = vld [vmem:[%s6] sm:$0xff]
      %v1517 = vld [vmem:[%s6 + $0x8] sm:$0xff]
      %v1518 = vld [vmem:[%s6 + $0x10] sm:$0xff]
      %v1519 = vld [vmem:[%s6 + $0x18] sm:$0xff]
      %v1520 = vld [vmem:[%s7] sm:$0x1]
      %v1522 = vlaneseq
      %v1523 = vshrl.u32 %v1522, 7
      %v1524 = vsub.s32 0, %v1523
      %v1525 = vrot.slane %v1520, %v1524
      %v1528 = vsel %vm767, %v1515, 0
      %1530 = vmatprep.subr.mxu0 0.0
      %1531 = vmatpush1.msra.mxu0 %v1516
      %1532 = vmatprep.subr.mxu0 0.0
      %1533 = vmatpush1.msra.mxu0 %v1517
      %1534 = vmatprep.subr.mxu0 0.0
      %1535 = vmatpush1.msra.mxu0 %v1518
      %1536 = vmatprep.subr.mxu0 0.0
      %1537 = vmatpush1.msra.mxu0 %v1519
      %1538 = vmatprep.subr.mxu0 0.0
      %1539 = vmatpush1.msra.mxu0 0.0
      %1540 = vmatprep.subr.mxu0 0.0
      %1541 = vmatpush1.msra.mxu0 0.0
      %1542 = vmatprep.subr.mxu0 0.0
      %1543 = vmatpush1.msra.mxu0 0.0
      %1544 = vmatprep.subr.mxu0 0.0
      %1545 = vmatpush1.msra.mxu0 0.0
      %1546 = vmatprep.subr.mxu0 0.0
      %1547 = vmatpush1.msra.mxu0 0.0
      %1548 = vmatprep.subr.mxu0 0.0
      %1549 = vmatpush1.msra.mxu0 0.0
      %1550 = vmatprep.subr.mxu0 0.0
      %1551 = vmatpush1.msra.mxu0 0.0
      %1552 = vmatprep.subr.mxu0 0.0
      %1553 = vmatpush1.msra.mxu0 0.0
      %1554 = vmatprep.subr.mxu0 0.0
      %1555 = vmatpush1.msra.mxu0 0.0
      %1556 = vmatprep.subr.mxu0 0.0
      %1557 = vmatpush1.msra.mxu0 0.0
      %1558 = vmatprep.subr.mxu0 0.0
      %1559 = vmatpush1.msra.mxu0 0.0
      %1560 = vmatprep.subr.mxu0 0.0
      %1561 = vmatpush1.msra.mxu0 0.0
      %1562 = vmatprep.subr.mxu0 0.0
      %1563 = vmatpush1.msra.mxu0 0.0
      %1564 = vmatprep.subr.mxu0 0.0
      %1565 = vmatpush1.msra.mxu0 0.0
      %1566 = vmatprep.subr.mxu0 0.0
      %1567 = vmatpush1.msra.mxu0 0.0
      %1568 = vmatprep.subr.mxu0 0.0
      %1569 = vmatpush1.msra.mxu0 0.0
      %1570 = vmatprep.subr.mxu0 0.0
      %1571 = vmatpush1.msra.mxu0 0.0
      %1572 = vmatprep.subr.mxu0 0.0
      %1573 = vmatpush1.msra.mxu0 0.0
      %1574 = vmatprep.subr.mxu0 0.0
      %1575 = vmatpush1.msra.mxu0 0.0
      %1576 = vmatprep.subr.mxu0 0.0
      %1577 = vmatpush1.msra.mxu0 0.0
      %1578 = vmatprep.subr.mxu0 0.0
      %1579 = vmatpush1.msra.mxu0 0.0
      %1580 = vmatprep.subr.mxu0 0.0
      %1581 = vmatpush1.msra.mxu0 0.0
      %1582 = vmatprep.subr.mxu0 0.0
      %1583 = vmatpush1.msra.mxu0 0.0
      %1584 = vmatprep.subr.mxu0 0.0
      %1585 = vmatpush1.msra.mxu0 0.0
      %1586 = vmatprep.subr.mxu0 0.0
      %1587 = vmatpush1.msra.mxu0 0.0
      %1588 = vmatprep.subr.mxu0 0.0
      %1589 = vmatpush1.msra.mxu0 0.0
      %1590 = vmatprep.subr.mxu0 0.0
      %1591 = vmatpush1.msra.mxu0 0.0
      %1592 = vmatprep.subr.mxu0 0.0
      %1593 = vmatpush1.msra.mxu0 0.0
      %1594 = vmatprep.mubr.f32.mxu0 0.0
      %1595 = vmatmul.mubr.f32.gmra.mrb[0].mxu0 %v1528
      %v1596 = vpop.f32.mrb[0].mxu0
      %v1597 = vadd.f32 %v1525, %v1596
      %v1598 = vpop.f32.mrb[0].mxu0
      %1599 = vdwg.mxu0
      %1601 = vrot.lane.b32.xlu0 %v1597, 96
      %v1602 = vpop.permute.xlu0 %1601
      %v1603 = vsel %vm642, %v1597, 0
      %v1605 = vsel %vm642, %v1602, 0
      %1607 = vmatprep.subr.mxu0 0.0
      %1608 = vmatpush1.xpose.msra.mxu0 %v1605
      %1609 = vmatprep.subr.mxu0 0.0
      %1610 = vmatpush1.xpose.msra.mxu0 0.0
      %1611 = vmatprep.subr.mxu0 0.0
      %1612 = vmatpush1.xpose.msra.mxu0 0.0
      %1613 = vmatprep.subr.mxu0 0.0
      %1614 = vmatpush1.xpose.msra.mxu0 0.0
      %1615 = vmatprep.subr.mxu0 0.0
      %1616 = vmatpush1.xpose.msra.mxu0 0.0
      %1617 = vmatprep.subr.mxu0 0.0
      %1618 = vmatpush1.xpose.msra.mxu0 0.0
      %1619 = vmatprep.subr.mxu0 0.0
      %1620 = vmatpush1.xpose.msra.mxu0 0.0
      %1621 = vmatprep.subr.mxu0 0.0
      %1622 = vmatpush1.xpose.msra.mxu0 0.0
      %1623 = vmatprep.subr.mxu0 0.0
      %1624 = vmatpush1.xpose.msra.mxu0 0.0
      %1625 = vmatprep.subr.mxu0 0.0
      %1626 = vmatpush1.xpose.msra.mxu0 0.0
      %1627 = vmatprep.subr.mxu0 0.0
      %1628 = vmatpush1.xpose.msra.mxu0 0.0
      %1629 = vmatprep.subr.mxu0 0.0
      %1630 = vmatpush1.xpose.msra.mxu0 0.0
      %1631 = vmatprep.subr.mxu0 0.0
      %1632 = vmatpush1.xpose.msra.mxu0 0.0
      %1633 = vmatprep.subr.mxu0 0.0
      %1634 = vmatpush1.xpose.msra.mxu0 0.0
      %1635 = vmatprep.subr.mxu0 0.0
      %1636 = vmatpush1.xpose.msra.mxu0 0.0
      %1637 = vmatprep.subr.mxu0 0.0
      %1638 = vmatpush1.xpose.msra.mxu0 0.0
      %1639 = vmatprep.subr.mxu0 0.0
      %1640 = vmatpush1.xpose.msra.mxu0 0.0
      %1641 = vmatprep.subr.mxu0 0.0
      %1642 = vmatpush1.xpose.msra.mxu0 0.0
      %1643 = vmatprep.subr.mxu0 0.0
      %1644 = vmatpush1.xpose.msra.mxu0 0.0
      %1645 = vmatprep.subr.mxu0 0.0
      %1646 = vmatpush1.xpose.msra.mxu0 0.0
      %1647 = vmatprep.subr.mxu0 0.0
      %1648 = vmatpush1.xpose.msra.mxu0 0.0
      %1649 = vmatprep.subr.mxu0 0.0
      %1650 = vmatpush1.xpose.msra.mxu0 0.0
      %1651 = vmatprep.subr.mxu0 0.0
      %1652 = vmatpush1.xpose.msra.mxu0 0.0
      %1653 = vmatprep.subr.mxu0 0.0
      %1654 = vmatpush1.xpose.msra.mxu0 0.0
      %1655 = vmatprep.subr.mxu0 0.0
      %1656 = vmatpush1.xpose.msra.mxu0 0.0
      %1657 = vmatprep.subr.mxu0 0.0
      %1658 = vmatpush1.xpose.msra.mxu0 0.0
      %1659 = vmatprep.subr.mxu0 0.0
      %1660 = vmatpush1.xpose.msra.mxu0 0.0
      %1661 = vmatprep.subr.mxu0 0.0
      %1662 = vmatpush1.xpose.msra.mxu0 0.0
      %1663 = vmatprep.subr.mxu0 0.0
      %1664 = vmatpush1.xpose.msra.mxu0 0.0
      %1665 = vmatprep.subr.mxu0 0.0
      %1666 = vmatpush1.xpose.msra.mxu0 0.0
      %1667 = vmatprep.subr.mxu0 0.0
      %1668 = vmatpush1.xpose.msra.mxu0 0.0
      %1669 = vmatprep.subr.mxu0 0.0
      %1670 = vmatpush1.xpose.msra.mxu0 0.0
      %1671 = vmatprep.mubr.f32.mxu0 0.0
      %1672 = vmatmul.mubr.f32.gmra.mrb[0].mxu0 %v1603
      %v1673 = vpop.f32.mrb[0].mxu0
      %v1674 = vadd.f32 0.0, %v1673
      %v1675 = vpop.f32.mrb[0].mxu0
      %1676 = vdwg.mxu0
      %v1677 = vmul.f32 %v1674, 0.25
      %v1678 = vadd.f32 %v1677, %v923
      %v1679 = vsel %vm926, %v1678, -inf
      %1680 = vmax.xlane.f32.xlu0 %v1679
      %v1681 = vpop.xlane.xlu0 %1680
      %v1682 = vsub.f32 %v1678, %v1681
      %v1683 = vmul.f32 %v1682, 1.442695
      %v1684 = vpow.pop %v1683
      %v1685 = vsel %vm926, %v1684, 0.0
      %1686 = vadd.xlane.f32.xlu0 %v1685
      %v1687 = vpop.xlane.xlu0 %1686
      %v1688 = vrcp.pop %v1687
      %v1689 = vmul.f32 %v1684, %v1688
      %1690 = vrot.lane.b32.xlu0 %v1597, 64
      %v1691 = vpop.permute.xlu0 %1690
      %v1694 = vsel %vm926, %v1689, 0
      %1696 = vmatprep.subr.mxu0 0.0
      %1697 = vmatpush1.msra.mxu0 %v1691
      %1698 = vmatprep.subr.mxu0 0.0
      %1699 = vmatpush1.msra.mxu0 0.0
      %1700 = vmatprep.subr.mxu0 0.0
      %1701 = vmatpush1.msra.mxu0 0.0
      %1702 = vmatprep.subr.mxu0 0.0
      %1703 = vmatpush1.msra.mxu0 0.0
      %1704 = vmatprep.subr.mxu0 0.0
      %1705 = vmatpush1.msra.mxu0 0.0
      %1706 = vmatprep.subr.mxu0 0.0
      %1707 = vmatpush1.msra.mxu0 0.0
      %1708 = vmatprep.subr.mxu0 0.0
      %1709 = vmatpush1.msra.mxu0 0.0
      %1710 = vmatprep.subr.mxu0 0.0
      %1711 = vmatpush1.msra.mxu0 0.0
      %1712 = vmatprep.subr.mxu0 0.0
      %1713 = vmatpush1.msra.mxu0 0.0
      %1714 = vmatprep.subr.mxu0 0.0
      %1715 = vmatpush1.msra.mxu0 0.0
      %1716 = vmatprep.subr.mxu0 0.0
      %1717 = vmatpush1.msra.mxu0 0.0
      %1718 = vmatprep.subr.mxu0 0.0
      %1719 = vmatpush1.msra.mxu0 0.0
      %1720 = vmatprep.subr.mxu0 0.0
      %1721 = vmatpush1.msra.mxu0 0.0
      %1722 = vmatprep.subr.mxu0 0.0
      %1723 = vmatpush1.msra.mxu0 0.0
      %1724 = vmatprep.subr.mxu0 0.0
      %1725 = vmatpush1.msra.mxu0 0.0
      %1726 = vmatprep.subr.mxu0 0.0
      %1727 = vmatpush1.msra.mxu0 0.0
      %1728 = vmatprep.subr.mxu0 0.0
      %1729 = vmatpush1.msra.mxu0 0.0
      %1730 = vmatprep.subr.mxu0 0.0
      %1731 = vmatpush1.msra.mxu0 0.0
      %1732 = vmatprep.subr.mxu0 0.0
      %1733 = vmatpush1.msra.mxu0 0.0
      %1734 = vmatprep.subr.mxu0 0.0
      %1735 = vmatpush1.msra.mxu0 0.0
      %1736 = vmatprep.subr.mxu0 0.0
      %1737 = vmatpush1.msra.mxu0 0.0
      %1738 = vmatprep.subr.mxu0 0.0
      %1739 = vmatpush1.msra.mxu0 0.0
      %1740 = vmatprep.subr.mxu0 0.0
      %1741 = vmatpush1.msra.mxu0 0.0
      %1742 = vmatprep.subr.mxu0 0.0
      %1743 = vmatpush1.msra.mxu0 0.0
      %1744 = vmatprep.subr.mxu0 0.0
      %1745 = vmatpush1.msra.mxu0 0.0
      %1746 = vmatprep.subr.mxu0 0.0
      %1747 = vmatpush1.msra.mxu0 0.0
      %1748 = vmatprep.subr.mxu0 0.0
      %1749 = vmatpush1.msra.mxu0 0.0
      %1750 = vmatprep.subr.mxu0 0.0
      %1751 = vmatpush1.msra.mxu0 0.0
      %1752 = vmatprep.subr.mxu0 0.0
      %1753 = vmatpush1.msra.mxu0 0.0
      %1754 = vmatprep.subr.mxu0 0.0
      %1755 = vmatpush1.msra.mxu0 0.0
      %1756 = vmatprep.subr.mxu0 0.0
      %1757 = vmatpush1.msra.mxu0 0.0
      %1758 = vmatprep.subr.mxu0 0.0
      %1759 = vmatpush1.msra.mxu0 0.0
      %1760 = vmatprep.mubr.f32.mxu0 0.0
      %1761 = vmatmul.mubr.f32.gmra.mrb[0].mxu0 %v1694
      %v1762 = vpop.f32.mrb[0].mxu0
      %v1763 = vadd.f32 0.0, %v1762
      %v1764 = vpop.f32.mrb[0].mxu0
      %1765 = vdwg.mxu0
      %1766 = vst.msk [vmem:[#allocation2] sm:$0xff] %vm642, %v1763
      %1767 = vrot.lane.b32.xlu0 %v1597, 112
      %v1768 = vpop.permute.xlu0 %1767
      %1769 = vrot.lane.b32.xlu0 %v1597, 80
      %v1770 = vpop.permute.xlu0 %1769
      %v1771 = vsel %vm642, %v1768, 0
      %v1773 = vsel %vm642, %v1770, 0
      %1775 = vmatprep.subr.mxu0 0.0
      %1776 = vmatpush1.xpose.msra.mxu0 %v1773
      %1777 = vmatprep.subr.mxu0 0.0
      %1778 = vmatpush1.xpose.msra.mxu0 0.0
      %1779 = vmatprep.subr.mxu0 0.0
      %1780 = vmatpush1.xpose.msra.mxu0 0.0
      %1781 = vmatprep.subr.mxu0 0.0
      %1782 = vmatpush1.xpose.msra.mxu0 0.0
      %1783 = vmatprep.subr.mxu0 0.0
      %1784 = vmatpush1.xpose.msra.mxu0 0.0
      %1785 = vmatprep.subr.mxu0 0.0
      %1786 = vmatpush1.xpose.msra.mxu0 0.0
      %1787 = vmatprep.subr.mxu0 0.0
      %1788 = vmatpush1.xpose.msra.mxu0 0.0
      %1789 = vmatprep.subr.mxu0 0.0
      %1790 = vmatpush1.xpose.msra.mxu0 0.0
      %1791 = vmatprep.subr.mxu0 0.0
      %1792 = vmatpush1.xpose.msra.mxu0 0.0
      %1793 = vmatprep.subr.mxu0 0.0
      %1794 = vmatpush1.xpose.msra.mxu0 0.0
      %1795 = vmatprep.subr.mxu0 0.0
      %1796 = vmatpush1.xpose.msra.mxu0 0.0
      %1797 = vmatprep.subr.mxu0 0.0
      %1798 = vmatpush1.xpose.msra.mxu0 0.0
      %1799 = vmatprep.subr.mxu0 0.0
      %1800 = vmatpush1.xpose.msra.mxu0 0.0
      %1801 = vmatprep.subr.mxu0 0.0
      %1802 = vmatpush1.xpose.msra.mxu0 0.0
      %1803 = vmatprep.subr.mxu0 0.0
      %1804 = vmatpush1.xpose.msra.mxu0 0.0
      %1805 = vmatprep.subr.mxu0 0.0
      %1806 = vmatpush1.xpose.msra.mxu0 0.0
      %1807 = vmatprep.subr.mxu0 0.0
      %1808 = vmatpush1.xpose.msra.mxu0 0.0
      %1809 = vmatprep.subr.mxu0 0.0
      %1810 = vmatpush1.xpose.msra.mxu0 0.0
      %1811 = vmatprep.subr.mxu0 0.0
      %1812 = vmatpush1.xpose.msra.mxu0 0.0
      %1813 = vmatprep.subr.mxu0 0.0
      %1814 = vmatpush1.xpose.msra.mxu0 0.0
      %1815 = vmatprep.subr.mxu0 0.0
      %1816 = vmatpush1.xpose.msra.mxu0 0.0
      %1817 = vmatprep.subr.mxu0 0.0
      %1818 = vmatpush1.xpose.msra.mxu0 0.0
      %1819 = vmatprep.subr.mxu0 0.0
      %1820 = vmatpush1.xpose.msra.mxu0 0.0
      %1821 = vmatprep.subr.mxu0 0.0
      %1822 = vmatpush1.xpose.msra.mxu0 0.0
      %1823 = vmatprep.subr.mxu0 0.0
      %1824 = vmatpush1.xpose.msra.mxu0 0.0
      %1825 = vmatprep.subr.mxu0 0.0
      %1826 = vmatpush1.xpose.msra.mxu0 0.0
      %1827 = vmatprep.subr.mxu0 0.0
      %1828 = vmatpush1.xpose.msra.mxu0 0.0
      %1829 = vmatprep.subr.mxu0 0.0
      %1830 = vmatpush1.xpose.msra.mxu0 0.0
      %1831 = vmatprep.subr.mxu0 0.0
      %1832 = vmatpush1.xpose.msra.mxu0 0.0
      %1833 = vmatprep.subr.mxu0 0.0
      %1834 = vmatpush1.xpose.msra.mxu0 0.0
      %1835 = vmatprep.subr.mxu0 0.0
      %1836 = vmatpush1.xpose.msra.mxu0 0.0
      %1837 = vmatprep.subr.mxu0 0.0
      %1838 = vmatpush1.xpose.msra.mxu0 0.0
      %1839 = vmatprep.mubr.f32.mxu0 0.0
      %1840 = vmatmul.mubr.f32.gmra.mrb[0].mxu0 %v1771
      %v1841 = vpop.f32.mrb[0].mxu0
      %v1842 = vadd.f32 0.0, %v1841
      %v1843 = vpop.f32.mrb[0].mxu0
      %1844 = vdwg.mxu0
      %v1845 = vmul.f32 %v1842, 0.25
      %v1846 = vadd.f32 %v1845, %v923
      %v1847 = vsel %vm926, %v1846, -inf
      %1848 = vmax.xlane.f32.xlu0 %v1847
      %v1849 = vpop.xlane.xlu0 %1848
      %v1850 = vsub.f32 %v1846, %v1849
      %v1851 = vmul.f32 %v1850, 1.442695
      %v1852 = vpow.pop %v1851
      %v1853 = vsel %vm926, %v1852, 0.0
      %1854 = vadd.xlane.f32.xlu0 %v1853
      %v1855 = vpop.xlane.xlu0 %1854
      %v1856 = vrcp.pop %v1855
      %v1857 = vmul.f32 %v1852, %v1856
      %1858 = vrot.lane.b32.xlu0 %v1597, 48
      %v1859 = vpop.permute.xlu0 %1858
      %v1862 = vsel %vm926, %v1857, 0
      %1864 = vmatprep.subr.mxu0 0.0
      %1865 = vmatpush1.msra.mxu0 %v1859
      %1866 = vmatprep.subr.mxu0 0.0
      %1867 = vmatpush1.msra.mxu0 0.0
      %1868 = vmatprep.subr.mxu0 0.0
      %1869 = vmatpush1.msra.mxu0 0.0
      %1870 = vmatprep.subr.mxu0 0.0
      %1871 = vmatpush1.msra.mxu0 0.0
      %1872 = vmatprep.subr.mxu0 0.0
      %1873 = vmatpush1.msra.mxu0 0.0
      %1874 = vmatprep.subr.mxu0 0.0
      %1875 = vmatpush1.msra.mxu0 0.0
      %1876 = vmatprep.subr.mxu0 0.0
      %1877 = vmatpush1.msra.mxu0 0.0
      %1878 = vmatprep.subr.mxu0 0.0
      %1879 = vmatpush1.msra.mxu0 0.0
      %1880 = vmatprep.subr.mxu0 0.0
      %1881 = vmatpush1.msra.mxu0 0.0
      %1882 = vmatprep.subr.mxu0 0.0
      %1883 = vmatpush1.msra.mxu0 0.0
      %1884 = vmatprep.subr.mxu0 0.0
      %1885 = vmatpush1.msra.mxu0 0.0
      %1886 = vmatprep.subr.mxu0 0.0
      %1887 = vmatpush1.msra.mxu0 0.0
      %1888 = vmatprep.subr.mxu0 0.0
      %1889 = vmatpush1.msra.mxu0 0.0
      %1890 = vmatprep.subr.mxu0 0.0
      %1891 = vmatpush1.msra.mxu0 0.0
      %1892 = vmatprep.subr.mxu0 0.0
      %1893 = vmatpush1.msra.mxu0 0.0
      %1894 = vmatprep.subr.mxu0 0.0
      %1895 = vmatpush1.msra.mxu0 0.0
      %1896 = vmatprep.subr.mxu0 0.0
      %1897 = vmatpush1.msra.mxu0 0.0
      %1898 = vmatprep.subr.mxu0 0.0
      %1899 = vmatpush1.msra.mxu0 0.0
      %1900 = vmatprep.subr.mxu0 0.0
      %1901 = vmatpush1.msra.mxu0 0.0
      %1902 = vmatprep.subr.mxu0 0.0
      %1903 = vmatpush1.msra.mxu0 0.0
      %1904 = vmatprep.subr.mxu0 0.0
      %1905 = vmatpush1.msra.mxu0 0.0
      %1906 = vmatprep.subr.mxu0 0.0
      %1907 = vmatpush1.msra.mxu0 0.0
      %1908 = vmatprep.subr.mxu0 0.0
      %1909 = vmatpush1.msra.mxu0 0.0
      %1910 = vmatprep.subr.mxu0 0.0
      %1911 = vmatpush1.msra.mxu0 0.0
      %1912 = vmatprep.subr.mxu0 0.0
      %1913 = vmatpush1.msra.mxu0 0.0
      %1914 = vmatprep.subr.mxu0 0.0
      %1915 = vmatpush1.msra.mxu0 0.0
      %1916 = vmatprep.subr.mxu0 0.0
      %1917 = vmatpush1.msra.mxu0 0.0
      %1918 = vmatprep.subr.mxu0 0.0
      %1919 = vmatpush1.msra.mxu0 0.0
      %1920 = vmatprep.subr.mxu0 0.0
      %1921 = vmatpush1.msra.mxu0 0.0
      %1922 = vmatprep.subr.mxu0 0.0
      %1923 = vmatpush1.msra.mxu0 0.0
      %1924 = vmatprep.subr.mxu0 0.0
      %1925 = vmatpush1.msra.mxu0 0.0
      %1926 = vmatprep.subr.mxu0 0.0
      %1927 = vmatpush1.msra.mxu0 0.0
      %1928 = vmatprep.mubr.f32.mxu0 0.0
      %1929 = vmatmul.mubr.f32.gmra.mrb[0].mxu0 %v1862
      %v1930 = vpop.f32.mrb[0].mxu0
      %v1931 = vadd.f32 0.0, %v1930
      %v1932 = vpop.f32.mrb[0].mxu0
      %1933 = vdwg.mxu0
      %1935 = vrot.lane.b32.xlu0 %v1931, 16
      %v1936 = vpop.permute.xlu0 %1935
      %1938 = vst.msk [vmem:[#allocation2] sm:$0xff] %vm1186, %v1936
      %v1939 = vld [vmem:[#allocation2] sm:$0xff]
      %v1940 = vld [vmem:[%s8] sm:$0xff]
      %v1941 = vld [vmem:[%s8 + $0x8] sm:$0xff]
      %v1942 = vld [vmem:[%s8 + $0x10] sm:$0xff]
      %v1943 = vld [vmem:[%s8 + $0x18] sm:$0xff]
      %v1944 = vld [vmem:[%s9] sm:$0x1]
      %v1946 = vlaneseq
      %v1947 = vshrl.u32 %v1946, 7
      %v1948 = vsub.s32 0, %v1947
      %v1949 = vrot.slane %v1944, %v1948
      %v1952 = vsel %vm767, %v1939, 0
      %1954 = vmatprep.subr.mxu0 0.0
      %1955 = vmatpush1.msra.mxu0 %v1940
      %1956 = vmatprep.subr.mxu0 0.0
      %1957 = vmatpush1.msra.mxu0 %v1941
      %1958 = vmatprep.subr.mxu0 0.0
      %1959 = vmatpush1.msra.mxu0 %v1942
      %1960 = vmatprep.subr.mxu0 0.0
      %1961 = vmatpush1.msra.mxu0 %v1943
      %1962 = vmatprep.subr.mxu0 0.0
      %1963 = vmatpush1.msra.mxu0 0.0
      %1964 = vmatprep.subr.mxu0 0.0
      %1965 = vmatpush1.msra.mxu0 0.0
      %1966 = vmatprep.subr.mxu0 0.0
      %1967 = vmatpush1.msra.mxu0 0.0
      %1968 = vmatprep.subr.mxu0 0.0
      %1969 = vmatpush1.msra.mxu0 0.0
      %1970 = vmatprep.subr.mxu0 0.0
      %1971 = vmatpush1.msra.mxu0 0.0
      %1972 = vmatprep.subr.mxu0 0.0
      %1973 = vmatpush1.msra.mxu0 0.0
      %1974 = vmatprep.subr.mxu0 0.0
      %1975 = vmatpush1.msra.mxu0 0.0
      %1976 = vmatprep.subr.mxu0 0.0
      %1977 = vmatpush1.msra.mxu0 0.0
      %1978 = vmatprep.subr.mxu0 0.0
      %1979 = vmatpush1.msra.mxu0 0.0
      %1980 = vmatprep.subr.mxu0 0.0
      %1981 = vmatpush1.msra.mxu0 0.0
      %1982 = vmatprep.subr.mxu0 0.0
      %1983 = vmatpush1.msra.mxu0 0.0
      %1984 = vmatprep.subr.mxu0 0.0
      %1985 = vmatpush1.msra.mxu0 0.0
      %1986 = vmatprep.subr.mxu0 0.0
      %1987 = vmatpush1.msra.mxu0 0.0
      %1988 = vmatprep.subr.mxu0 0.0
      %1989 = vmatpush1.msra.mxu0 0.0
      %1990 = vmatprep.subr.mxu0 0.0
      %1991 = vmatpush1.msra.mxu0 0.0
      %1992 = vmatprep.subr.mxu0 0.0
      %1993 = vmatpush1.msra.mxu0 0.0
      %1994 = vmatprep.subr.mxu0 0.0
      %1995 = vmatpush1.msra.mxu0 0.0
      %1996 = vmatprep.subr.mxu0 0.0
      %1997 = vmatpush1.msra.mxu0 0.0
      %1998 = vmatprep.subr.mxu0 0.0
      %1999 = vmatpush1.msra.mxu0 0.0
      %2000 = vmatprep.subr.mxu0 0.0
      %2001 = vmatpush1.msra.mxu0 0.0
      %2002 = vmatprep.subr.mxu0 0.0
      %2003 = vmatpush1.msra.mxu0 0.0
      %2004 = vmatprep.subr.mxu0 0.0
      %2005 = vmatpush1.msra.mxu0 0.0
      %2006 = vmatprep.subr.mxu0 0.0
      %2007 = vmatpush1.msra.mxu0 0.0
      %2008 = vmatprep.subr.mxu0 0.0
      %2009 = vmatpush1.msra.mxu0 0.0
      %2010 = vmatprep.subr.mxu0 0.0
      %2011 = vmatpush1.msra.mxu0 0.0
      %2012 = vmatprep.subr.mxu0 0.0
      %2013 = vmatpush1.msra.mxu0 0.0
      %2014 = vmatprep.subr.mxu0 0.0
      %2015 = vmatpush1.msra.mxu0 0.0
      %2016 = vmatprep.subr.mxu0 0.0
      %2017 = vmatpush1.msra.mxu0 0.0
      %2018 = vmatprep.mubr.f32.mxu0 0.0
      %2019 = vmatmul.mubr.f32.gmra.mrb[0].mxu0 %v1952
      %v2020 = vpop.f32.mrb[0].mxu0
      %v2021 = vadd.f32 %v1949, %v2020
      %v2022 = vpop.f32.mrb[0].mxu0
      %2023 = vdwg.mxu0
      %v2024 = vadd.f32 %v2021, %v1515
      %v2025 = vld [vmem:[%s10] sm:$0x1]
      %v2026 = vld [vmem:[%s11] sm:$0x1]
      %v2027 = vsel %vm767, %v2024, 0.0
      %2028 = vadd.xlane.f32.xlu0 %v2027
      %v2029 = vpop.xlane.xlu0 %2028
      %v2030 = vmul.f32 %v2029, %v1279
      %v2031 = vsub.f32 %v2024, %v2030
      %v2032 = vmul.f32 %v2031, %v2031
      %v2033 = vsel %vm767, %v2032, 0.0
      %2034 = vadd.xlane.f32.xlu0 %v2033
      %v2035 = vpop.xlane.xlu0 %2034
      %v2036 = vmul.f32 %v2035, %v1279
      %v2037 = vadd.f32 %v2036, 1e-12
      %v2038 = vrsqrt.pop %v2037
      %v2039 = vmul.f32 %v2031, %v2038
      %v2041 = vlaneseq
      %v2042 = vshrl.u32 %v2041, 7
      %v2043 = vsub.s32 0, %v2042
      %v2044 = vrot.slane %v2025, %v2043
      %v2046 = vmul.f32 %v2039, %v2044
      %v2048 = vlaneseq
      %v2049 = vshrl.u32 %v2048, 7
      %v2050 = vsub.s32 0, %v2049
      %v2051 = vrot.slane %v2026, %v2050
      %v2053 = vadd.f32 %v2046, %v2051
      %v2054 = vld [vmem:[%s12] sm:$0xff]
      %v2055 = vld [vmem:[%s12 + $0x8] sm:$0xff]
      %v2056 = vld [vmem:[%s12 + $0x10] sm:$0xff]
      %v2057 = vld [vmem:[%s12 + $0x18] sm:$0xff]
      %v2058 = vld [vmem:[%s13] sm:$0x1]
      %v2060 = vlaneseq
      %v2061 = vshrl.u32 %v2060, 7
      %v2062 = vsub.s32 0, %v2061
      %v2063 = vrot.slane %v2058, %v2062
      %v2066 = vsel %vm767, %v2053, 0
      %2068 = vmatprep.subr.mxu0 0.0
      %2069 = vmatpush1.msra.mxu0 %v2054
      %2070 = vmatprep.subr.mxu0 0.0
      %2071 = vmatpush1.msra.mxu0 %v2055
      %2072 = vmatprep.subr.mxu0 0.0
      %2073 = vmatpush1.msra.mxu0 %v2056
      %2074 = vmatprep.subr.mxu0 0.0
      %2075 = vmatpush1.msra.mxu0 %v2057
      %2076 = vmatprep.subr.mxu0 0.0
      %2077 = vmatpush1.msra.mxu0 0.0
      %2078 = vmatprep.subr.mxu0 0.0
      %2079 = vmatpush1.msra.mxu0 0.0
      %2080 = vmatprep.subr.mxu0 0.0
      %2081 = vmatpush1.msra.mxu0 0.0
      %2082 = vmatprep.subr.mxu0 0.0
      %2083 = vmatpush1.msra.mxu0 0.0
      %2084 = vmatprep.subr.mxu0 0.0
      %2085 = vmatpush1.msra.mxu0 0.0
      %2086 = vmatprep.subr.mxu0 0.0
      %2087 = vmatpush1.msra.mxu0 0.0
      %2088 = vmatprep.subr.mxu0 0.0
      %2089 = vmatpush1.msra.mxu0 0.0
      %2090 = vmatprep.subr.mxu0 0.0
      %2091 = vmatpush1.msra.mxu0 0.0
      %2092 = vmatprep.subr.mxu0 0.0
      %2093 = vmatpush1.msra.mxu0 0.0
      %2094 = vmatprep.subr.mxu0 0.0
      %2095 = vmatpush1.msra.mxu0 0.0
      %2096 = vmatprep.subr.mxu0 0.0
      %2097 = vmatpush1.msra.mxu0 0.0
      %2098 = vmatprep.subr.mxu0 0.0
      %2099 = vmatpush1.msra.mxu0 0.0
      %2100 = vmatprep.subr.mxu0 0.0
      %2101 = vmatpush1.msra.mxu0 0.0
      %2102 = vmatprep.subr.mxu0 0.0
      %2103 = vmatpush1.msra.mxu0 0.0
      %2104 = vmatprep.subr.mxu0 0.0
      %2105 = vmatpush1.msra.mxu0 0.0
      %2106 = vmatprep.subr.mxu0 0.0
      %2107 = vmatpush1.msra.mxu0 0.0
      %2108 = vmatprep.subr.mxu0 0.0
      %2109 = vmatpush1.msra.mxu0 0.0
      %2110 = vmatprep.subr.mxu0 0.0
      %2111 = vmatpush1.msra.mxu0 0.0
      %2112 = vmatprep.subr.mxu0 0.0
      %2113 = vmatpush1.msra.mxu0 0.0
      %2114 = vmatprep.subr.mxu0 0.0
      %2115 = vmatpush1.msra.mxu0 0.0
      %2116 = vmatprep.subr.mxu0 0.0
      %2117 = vmatpush1.msra.mxu0 0.0
      %2118 = vmatprep.subr.mxu0 0.0
      %2119 = vmatpush1.msra.mxu0 0.0
      %2120 = vmatprep.subr.mxu0 0.0
      %2121 = vmatpush1.msra.mxu0 0.0
      %2122 = vmatprep.subr.mxu0 0.0
      %2123 = vmatpush1.msra.mxu0 0.0
      %2124 = vmatprep.subr.mxu0 0.0
      %2125 = vmatpush1.msra.mxu0 0.0
      %2126 = vmatprep.subr.mxu0 0.0
      %2127 = vmatpush1.msra.mxu0 0.0
      %2128 = vmatprep.subr.mxu0 0.0
      %2129 = vmatpush1.msra.mxu0 0.0
      %2130 = vmatprep.subr.mxu0 0.0
      %2131 = vmatpush1.msra.mxu0 0.0
      %2132 = vmatprep.mubr.f32.mxu0 0.0
      %2133 = vmatmul.mubr.f32.gmra.mrb[0].mxu0 %v2066
      %v2134 = vpop.f32.mrb[0].mxu0
      %v2135 = vadd.f32 %v2063, %v2134
      %v2136 = vpop.f32.mrb[0].mxu0
      %2137 = vdwg.mxu0
      %v2138 = vmul.f32 %v2135, %v2135
      %v2139 = vmul.f32 %v2135, %v2138
      %v2140 = vmul.f32 %v2139, 0.044715
      %v2141 = vadd.f32 %v2135, %v2140
      %v2142 = vmul.f32 %v2141, 0.7978846
      %v2143 = vtanh.pop %v2142
      %v2144 = vadd.f32 %v2143, 1.0
      %v2145 = vmul.f32 %v2144, 0.5
      %v2146 = vmul.f32 %v2135, %v2145
      %v2147 = vld [vmem:[%s14] sm:$0xff]
      %v2148 = vld [vmem:[%s14 + $0x8] sm:$0xff]
      %v2149 = vld [vmem:[%s14 + $0x10] sm:$0xff]
      %v2150 = vld [vmem:[%s14 + $0x18] sm:$0xff]
      %v2151 = vld [vmem:[%s14 + $0x20] sm:$0xff]
      %v2152 = vld [vmem:[%s14 + $0x28] sm:$0xff]
      %v2153 = vld [vmem:[%s14 + $0x30] sm:$0xff]
      %v2154 = vld [vmem:[%s14 + $0x38] sm:$0xff]
      %v2155 = vld [vmem:[%s15] sm:$0x1]
      %v2157 = vlaneseq
      %v2158 = vshrl.u32 %v2157, 7
      %v2159 = vsub.s32 0, %v2158
      %v2160 = vrot.slane %v2155, %v2159
      %v2163 = vsel %vm1412, %v2146, 0
      %2165 = vmatprep.subr.mxu0 0.0
      %2166 = vmatpush1.msra.mxu0 %v2147
      %2167 = vmatprep.subr.mxu0 0.0
      %2168 = vmatpush1.msra.mxu0 %v2148
      %2169 = vmatprep.subr.mxu0 0.0
      %2170 = vmatpush1.msra.mxu0 %v2149
      %2171 = vmatprep.subr.mxu0 0.0
      %2172 = vmatpush1.msra.mxu0 %v2150
      %2173 = vmatprep.subr.mxu0 0.0
      %2174 = vmatpush1.msra.mxu0 %v2151
      %2175 = vmatprep.subr.mxu0 0.0
      %2176 = vmatpush1.msra.mxu0 %v2152
      %2177 = vmatprep.subr.mxu0 0.0
      %2178 = vmatpush1.msra.mxu0 %v2153
      %2179 = vmatprep.subr.mxu0 0.0
      %2180 = vmatpush1.msra.mxu0 %v2154
      %2181 = vmatprep.subr.mxu0 0.0
      %2182 = vmatpush1.msra.mxu0 0.0
      %2183 = vmatprep.subr.mxu0 0.0
      %2184 = vmatpush1.msra.mxu0 0.0
      %2185 = vmatprep.subr.mxu0 0.0
      %2186 = vmatpush1.msra.mxu0 0.0
      %2187 = vmatprep.subr.mxu0 0.0
      %2188 = vmatpush1.msra.mxu0 0.0
      %2189 = vmatprep.subr.mxu0 0.0
      %2190 = vmatpush1.msra.mxu0 0.0
      %2191 = vmatprep.subr.mxu0 0.0
      %2192 = vmatpush1.msra.mxu0 0.0
      %2193 = vmatprep.subr.mxu0 0.0
      %2194 = vmatpush1.msra.mxu0 0.0
      %2195 = vmatprep.subr.mxu0 0.0
      %2196 = vmatpush1.msra.mxu0 0.0
      %2197 = vmatprep.subr.mxu0 0.0
      %2198 = vmatpush1.msra.mxu0 0.0
      %2199 = vmatprep.subr.mxu0 0.0
      %2200 = vmatpush1.msra.mxu0 0.0
      %2201 = vmatprep.subr.mxu0 0.0
      %2202 = vmatpush1.msra.mxu0 0.0
      %2203 = vmatprep.subr.mxu0 0.0
      %2204 = vmatpush1.msra.mxu0 0.0
      %2205 = vmatprep.subr.mxu0 0.0
      %2206 = vmatpush1.msra.mxu0 0.0
      %2207 = vmatprep.subr.mxu0 0.0
      %2208 = vmatpush1.msra.mxu0 0.0
      %2209 = vmatprep.subr.mxu0 0.0
      %2210 = vmatpush1.msra.mxu0 0.0
      %2211 = vmatprep.subr.mxu0 0.0
      %2212 = vmatpush1.msra.mxu0 0.0
      %2213 = vmatprep.subr.mxu0 0.0
      %2214 = vmatpush1.msra.mxu0 0.0
      %2215 = vmatprep.subr.mxu0 0.0
      %2216 = vmatpush1.msra.mxu0 0.0
      %2217 = vmatprep.subr.mxu0 0.0
      %2218 = vmatpush1.msra.mxu0 0.0
      %2219 = vmatprep.subr.mxu0 0.0
      %2220 = vmatpush1.msra.mxu0 0.0
      %2221 = vmatprep.subr.mxu0 0.0
      %2222 = vmatpush1.msra.mxu0 0.0
      %2223 = vmatprep.subr.mxu0 0.0
      %2224 = vmatpush1.msra.mxu0 0.0
      %2225 = vmatprep.subr.mxu0 0.0
      %2226 = vmatpush1.msra.mxu0 0.0
      %2227 = vmatprep.subr.mxu0 0.0
      %2228 = vmatpush1.msra.mxu0 0.0
      %2229 = vmatprep.mubr.f32.mxu0 0.0
      %2230 = vmatmul.mubr.f32.gmra.mrb[0].mxu0 %v2163
      %v2231 = vpop.f32.mrb[0].mxu0
      %v2232 = vadd.f32 %v2160, %v2231
      %v2233 = vpop.f32.mrb[0].mxu0
      %2234 = vdwg.mxu0
      %v2235 = vadd.f32 %v2232, %v2053
      %v2236 = vld [vmem:[%s16] sm:$0x1]
      %v2237 = vld [vmem:[%s17] sm:$0x1]
      %v2238 = vsel %vm767, %v2235, 0.0
      %2239 = vadd.xlane.f32.xlu0 %v2238
      %v2240 = vpop.xlane.xlu0 %2239
      %v2241 = vmul.f32 %v2240, %v1279
      %v2242 = vsub.f32 %v2235, %v2241
      %v2243 = vmul.f32 %v2242, %v2242
      %v2244 = vsel %vm767, %v2243, 0.0
      %2245 = vadd.xlane.f32.xlu0 %v2244
      %v2246 = vpop.xlane.xlu0 %2245
      %v2247 = vmul.f32 %v2246, %v1279
      %v2248 = vadd.f32 %v2247, 1e-12
      %v2249 = vrsqrt.pop %v2248
      %v2250 = vmul.f32 %v2242, %v2249
      %v2252 = vlaneseq
      %v2253 = vshrl.u32 %v2252, 7
      %v2254 = vsub.s32 0, %v2253
      %v2255 = vrot.slane %v2236, %v2254
      %v2257 = vmul.f32 %v2250, %v2255
      %v2259 = vlaneseq
      %v2260 = vshrl.u32 %v2259, 7
      %v2261 = vsub.s32 0, %v2260
      %v2262 = vrot.slane %v2237, %v2261
      %v2264 = vadd.f32 %v2257, %v2262
      %v2265 = vld [vmem:[%s18] sm:$0xff]
      %v2266 = vld [vmem:[%s18 + $0x8] sm:$0xff]
      %v2267 = vld [vmem:[%s18 + $0x10] sm:$0xff]
      %v2268 = vld [vmem:[%s18 + $0x18] sm:$0xff]
      %v2269 = vld [vmem:[#allocation3] sm:$0x1]
      %v2271 = vsel %vm767, %v2264, 0
      %2273 = vmatprep.subr.mxu0 0.0
      %2274 = vmatpush1.msra.mxu0 %v2265
      %2275 = vmatprep.subr.mxu0 0.0
      %2276 = vmatpush1.msra.mxu0 %v2266
      %2277 = vmatprep.subr.mxu0 0.0
      %2278 = vmatpush1.msra.mxu0 %v2267
      %2279 = vmatprep.subr.mxu0 0.0
      %2280 = vmatpush1.msra.mxu0 %v2268
      %2281 = vmatprep.subr.mxu0 0.0
      %2282 = vmatpush1.msra.mxu0 0.0
      %2283 = vmatprep.subr.mxu0 0.0
      %2284 = vmatpush1.msra.mxu0 0.0
      %2285 = vmatprep.subr.mxu0 0.0
      %2286 = vmatpush1.msra.mxu0 0.0
      %2287 = vmatprep.subr.mxu0 0.0
      %2288 = vmatpush1.msra.mxu0 0.0
      %2289 = vmatprep.subr.mxu0 0.0
      %2290 = vmatpush1.msra.mxu0 0.0
      %2291 = vmatprep.subr.mxu0 0.0
      %2292 = vmatpush1.msra.mxu0 0.0
      %2293 = vmatprep.subr.mxu0 0.0
      %2294 = vmatpush1.msra.mxu0 0.0
      %2295 = vmatprep.subr.mxu0 0.0
      %2296 = vmatpush1.msra.mxu0 0.0
      %2297 = vmatprep.subr.mxu0 0.0
      %2298 = vmatpush1.msra.mxu0 0.0
      %2299 = vmatprep.subr.mxu0 0.0
      %2300 = vmatpush1.msra.mxu0 0.0
      %2301 = vmatprep.subr.mxu0 0.0
      %2302 = vmatpush1.msra.mxu0 0.0
      %2303 = vmatprep.subr.mxu0 0.0
      %2304 = vmatpush1.msra.mxu0 0.0
      %2305 = vmatprep.subr.mxu0 0.0
      %2306 = vmatpush1.msra.mxu0 0.0
      %2307 = vmatprep.subr.mxu0 0.0
      %2308 = vmatpush1.msra.mxu0 0.0
      %2309 = vmatprep.subr.mxu0 0.0
      %2310 = vmatpush1.msra.mxu0 0.0
      %2311 = vmatprep.subr.mxu0 0.0
      %2312 = vmatpush1.msra.mxu0 0.0
      %2313 = vmatprep.subr.mxu0 0.0
      %2314 = vmatpush1.msra.mxu0 0.0
      %2315 = vmatprep.subr.mxu0 0.0
      %2316 = vmatpush1.msra.mxu0 0.0
      %2317 = vmatprep.subr.mxu0 0.0
      %2318 = vmatpush1.msra.mxu0 0.0
      %2319 = vmatprep.subr.mxu0 0.0
      %2320 = vmatpush1.msra.mxu0 0.0
      %2321 = vmatprep.subr.mxu0 0.0
      %2322 = vmatpush1.msra.mxu0 0.0
      %2323 = vmatprep.subr.mxu0 0.0
      %2324 = vmatpush1.msra.mxu0 0.0
      %2325 = vmatprep.subr.mxu0 0.0
      %2326 = vmatpush1.msra.mxu0 0.0
      %2327 = vmatprep.subr.mxu0 0.0
      %2328 = vmatpush1.msra.mxu0 0.0
      %2329 = vmatprep.subr.mxu0 0.0
      %2330 = vmatpush1.msra.mxu0 0.0
      %2331 = vmatprep.subr.mxu0 0.0
      %2332 = vmatpush1.msra.mxu0 0.0
      %2333 = vmatprep.subr.mxu0 0.0
      %2334 = vmatpush1.msra.mxu0 0.0
      %2335 = vmatprep.subr.mxu0 0.0
      %2336 = vmatpush1.msra.mxu0 0.0
      %2337 = vmatprep.mubr.f32.mxu0 0.0
      %2338 = vmatmul.mubr.f32.gmra.mrb[0].mxu0 %v2271
      %v2339 = vpop.f32.mrb[0].mxu0
      %v2340 = vadd.f32 %v2269, %v2339
      %v2341 = vpop.f32.mrb[0].mxu0
      %2342 = vdwg.mxu0
      %v2343 = vxor.u32 %v2340, 2147483648
      %v2344 = vmul.f32 %v2343, 1.442695
      %v2345 = vpow.pop %v2344
      %v2346 = vadd.f32 %v2345, 1.0
      %v2347 = vrcp.pop %v2346
      %v2348 = vmul.f32 1.0, %v2347
      %vm2349 = vcmask 0
      %2350 = vst.msk [vmem:[%s638] sm:$0x1] %vm2349, %v2348
      %p2351 = scmp.lt.s32.totalorder %s33, 1
      %s2352 = scalar_select %p2351, %s33, 1
      %s2353 = scalar_lea.vmem %s20, %s2352
      // Predicated region
      $region101: #{name_classifier_forward.1} parent=99 // pred_check
        %p2354 = pneg %p481
      $region102: #{name_classifier_forward.1} parent=99 // pred_check_branch
        %2356 = sbr.rel (%p2354) target = $region104
      $region103: #{name_classifier_forward.1} parent=99 // pred_region
        _
      $region104: #{name_classifier_forward.1} parent=99 // pred_fallthru
        _
    $region100: #{name_classifier_forward.1} parent=5 // pred_fallthru
      _
    %p2357 = scmp.le.s32.totalorder 2, %s28
    // Predicated region
    $region105: #{name_classifier_forward.1} parent=5 // pred_check
      %p2358 = pneg %p2357
    $region106: #{name_classifier_forward.1} parent=5 // pred_check_branch
      %2360 = sbr.rel (%p2358) target = $region108
    $region107: #{name_classifier_forward.1} parent=5 // pred_region
      %s2361 = ssub.s32 %s28, 2
      // Predicated region
      $region109: #{name_classifier_forward.1} parent=107 // pred_check
        %p2362 = pneg %p487
      $region110: #{name_classifier_forward.1} parent=107 // pred_check_branch
        %2364 = sbr.rel (%p2362) target = $region112
      $region111: #{name_classifier_forward.1} parent=107 // pred_region
        %p2365 = scmp.lt.s32.totalorder %s34, 1
        %s2366 = scalar_select %p2365, %s34, 1
        %s2367 = scalar_lea.vmem %s20, %s2366
      $region112: #{name_classifier_forward.1} parent=107 // pred_fallthru
        _
    $region108: #{name_classifier_forward.1} parent=5 // pred_fallthru
      _
  $region6: #{name_classifier_forward.1} parent=0 // loop_footer
    %s32 = sadd.s32 1, %s28
  $region7: #{name_classifier_forward.1} parent=0 // loop_footer_branch
    %27 = sbr.rel target = $region3
  $region8: #{name_classifier_forward.1} parent=0 // loop_exit
    _

</llo_original>
